<compile_context>
chip_gen: v6e
topology: v6e:2x2x1
jax: 0.10.0
libtpu: 0.0.40
codegen_flags: <defaults>
</compile_context>

<pallas_src>
import functools

import jax
import jax.numpy as jnp
from jax.experimental import pallas as pl
from jax.experimental.pallas import tpu as pltpu

_SUBLANE = 8      # f32 sublane tile
_LANE = 128       # lane tile
_MIB = 1024 * 1024


def _round_up(n, m):
    return (n + m - 1) // m * m


def lstm_kernel(x_ref, w_ih_ref, w_hh_ref, b_ref, h_out_ref,
                gx_sc, h_sc, c_sc, *, seq_len, time_chunk, unroll):
    """One (batch-block, time-chunk) grid step of the LSTM forward.

    x_ref    : (Tc, Bb, I)    this chunk's inputs, time-major (mxu dtype)
    w_ih_ref : (I, 4*Hp)      input->gates weights, gate-major [i|f|g|o]
    w_hh_ref : (Hp, 4*Hp)     hidden->gates weights, gate-major [i|f|g|o]
    b_ref    : (1, 4*Hp)      combined bias b_ih + b_hh (f32)
    h_out_ref: (Bb, Hp)       last-timestep hidden state (f32, lane dense)
    gx_sc    : (Tc*Bb, 4*Hp)  per-chunk hoisted input projection (f32)
    h_sc,c_sc: (Bb, Hp)       h/c state carried across time chunks (f32)
    """
    t_chunk = pl.program_id(1)
    n_chunks = pl.num_programs(1)
    Bb, Hp = h_out_ref.shape
    Tc = time_chunk

    # --- reset the carried state at the first time chunk of this batch block
    @pl.when(t_chunk == 0)
    def _():
        h_sc[...] = jnp.zeros_like(h_sc)
        c_sc[...] = jnp.zeros_like(c_sc)

    # --- Hoisted input projection for this chunk: one MXU-friendly matmul ---
    x_flat = x_ref[...].reshape(Tc * Bb, x_ref.shape[-1])       # free: merges
    gx_sc[...] = (                                              # leading dims
        jnp.dot(x_flat, w_ih_ref[...], preferred_element_type=jnp.float32)
        + b_ref[...])

    mxu_dtype = w_hh_ref.dtype
    w_hh = w_hh_ref[...]                      # loop-invariant recurrent weight
    needs_mask = (seq_len % Tc) != 0          # static: only mask when padded T

    # --- Recurrence: only h_prev @ W_hh on the serial critical path ---
    def step(t, carry):
        h_prev, c_prev = carry                                  # f32 (Bb, Hp)
        row = pl.multiple_of(t * Bb, Bb)
        g_x = gx_sc[pl.ds(row, Bb), :]                          # (Bb, 4*Hp)
        gates = g_x + jnp.dot(h_prev.astype(mxu_dtype), w_hh,
                              preferred_element_type=jnp.float32)
        # sigmoid(x) = 0.5*tanh(0.5*x) + 0.5: tanh-only EUP path (5 tanh/step)
        i_g = 0.5 * jnp.tanh(0.5 * gates[:, 0 * Hp:1 * Hp]) + 0.5
        f_g = 0.5 * jnp.tanh(0.5 * gates[:, 1 * Hp:2 * Hp]) + 0.5
        g_g = jnp.tanh(gates[:, 2 * Hp:3 * Hp])
        o_g = 0.5 * jnp.tanh(0.5 * gates[:, 3 * Hp:4 * Hp]) + 0.5
        c_new = f_g * c_prev + i_g * g_g
        h_new = o_g * jnp.tanh(c_new)
        if needs_mask:
            # Padded tail timesteps (last chunk only at runtime): keep state.
            valid = (t_chunk * Tc + t) < seq_len
            h_new = jnp.where(valid, h_new, h_prev)
            c_new = jnp.where(valid, c_new, c_prev)
        return h_new, c_new

    h_last, c_last = jax.lax.fori_loop(0, Tc, step, (h_sc[...], c_sc[...]),
                                       unroll=unroll)
    h_sc[...] = h_last
    c_sc[...] = c_last

    @pl.when(t_chunk == n_chunks - 1)
    def _():
        h_out_ref[...] = h_last


def _pick_batch_block(bp):
    """Batch rows per grid step: >=8 sublanes, <=32 to bound vreg pressure,
    and >=2 blocks when bp >= 16 so v7x's two TensorCores both get work."""
    if bp <= _SUBLANE:
        return bp
    bb = (bp // 2) // _SUBLANE * _SUBLANE
    return max(_SUBLANE, min(32, bb))


def _vmem_footprint(tc, bb, in_size, hp, mxu_bytes):
    """Resident-VMEM estimate (blocked operands counted double-buffered)."""
    f32 = 4
    fixed = (2 * in_size * 4 * hp * mxu_bytes      # W_ih
             + 2 * hp * 4 * hp * mxu_bytes         # W_hh
             + 2 * 4 * hp * f32                    # bias
             + 2 * bb * hp * f32                   # h_out block
             + 2 * bb * hp * f32)                  # h/c carry scratch
    per_t = (2 * bb * in_size * mxu_bytes          # x chunk block
             + bb * 4 * hp * f32)                  # gates scratch rows
    return fixed, per_t


def lstm_model_forward(x, params, *, mxu_dtype=jnp.bfloat16):
    """x: (B, T, I) float32.  Returns sigmoid(fc(h_T)): (B, output_size) f32.

    Set mxu_dtype=jnp.float32 for bit-level parity with an f32 reference.
    """
    B, T, I = x.shape
    w_ih, w_hh = params["w_ih"], params["w_hh"]
    b_ih, b_hh = params["b_ih"], params["b_hh"]
    w_fc, b_fc = params["w_fc"], params["b_fc"]
    H = w_hh.shape[1]

    Bp = _round_up(B, _SUBLANE)        # pad batch to full sublane tiles
    Hp = _round_up(H, _LANE)           # pad hidden so each gate is lane-aligned
    Bb = _pick_batch_block(Bp)         # batch rows per grid step
    Bp = _round_up(Bp, Bb)
    nb = Bp // Bb

    mxu_bytes = jnp.dtype(mxu_dtype).itemsize

    # --- Per-generation VMEM budget -> time-chunk size ---------------------
    try:
        vmem_cap = pltpu.get_tpu_info().vmem_capacity_bytes
    except Exception:
        vmem_cap = 64 * _MIB           # conservative fallback (v7x-sized)
    budget = max(16 * _MIB, vmem_cap - 24 * _MIB)   # ~40 MiB v7x, ~104 MiB v6e

    fixed, per_t = _vmem_footprint(1, Bb, I, Hp, mxu_bytes)
    avail = budget - fixed
    if avail >= per_t:
        Tc = int(min(T, avail // per_t))
    else:
        # Weights alone nearly fill the budget; fall back to 1-step chunks.
        # TODO(synk): tile W_hh over the hidden dim if this ever OOMs VMEM.
        Tc = 1
    nt = -(-T // Tc)                   # cdiv
    T_pad = nt * Tc

    footprint = fixed + Tc * per_t
    vmem_limit = int(min(max(footprint + 4 * _MIB, 8 * _MIB),
                         vmem_cap - 8 * _MIB))

    # Unroll depth: keep the unrolled live set inside the 64-vreg file.
    unroll = int(min(Tc, 8 if Bb <= 8 else (4 if Bb <= 16 else 2)))

    # --- Pack operands into lane-aligned, gate-major padded layouts --------
    def pad_gate_weights(w, rows_to):
        # w: (4H, rows) PyTorch layout, gates stacked [i; f; g; o] on dim 0.
        # Returns (rows_to, 4*Hp) with gate k's columns starting at k*Hp.
        # Zero padding keeps the recurrence exact: padded hidden units stay 0.
        rows = w.shape[1]
        w_t = jnp.transpose(w).reshape(rows, 4, H)
        w_t = jnp.pad(w_t, ((0, rows_to - rows), (0, 0), (0, Hp - H)))
        return w_t.reshape(rows_to, 4 * Hp)

    w_ih_p = pad_gate_weights(w_ih, I).astype(mxu_dtype)      # (I, 4*Hp)
    w_hh_p = pad_gate_weights(w_hh, Hp).astype(mxu_dtype)     # (Hp, 4*Hp)
    b = (b_ih + b_hh).reshape(4, H)
    b_p = (jnp.pad(b, ((0, 0), (0, Hp - H)))
           .reshape(1, 4 * Hp).astype(jnp.float32))           # (1, 4*Hp)

    # Time-major layout so each (Tc, Bb, I) block is a contiguous x chunk.
    x_p = jnp.pad(x, ((0, Bp - B), (0, T_pad - T), (0, 0)))   # (Bp, T_pad, I)
    x_tm = jnp.transpose(x_p, (1, 0, 2)).astype(mxu_dtype)    # (T_pad, Bp, I)

    kernel = functools.partial(lstm_kernel, seq_len=T, time_chunk=Tc,
                               unroll=unroll)

    h_pad = pl.pallas_call(
        kernel,
        out_shape=jax.ShapeDtypeStruct((Bp, Hp), jnp.float32),
        grid=(nb, nt),
        in_specs=[
            pl.BlockSpec((Tc, Bb, I), lambda b, t: (t, b, 0)),     # x chunk
            pl.BlockSpec((I, 4 * Hp), lambda b, t: (0, 0)),        # W_ih
            pl.BlockSpec((Hp, 4 * Hp), lambda b, t: (0, 0)),       # W_hh
            pl.BlockSpec((1, 4 * Hp), lambda b, t: (0, 0)),        # bias
        ],
        out_specs=pl.BlockSpec((Bb, Hp), lambda b, t: (b, 0)),     # h_T
        scratch_shapes=[
            pltpu.VMEM((Tc * Bb, 4 * Hp), jnp.float32),   # hoisted projection
            pltpu.VMEM((Bb, Hp), jnp.float32),            # h carry
            pltpu.VMEM((Bb, Hp), jnp.float32),            # c carry
        ],
        compiler_params=pltpu.CompilerParams(
            dimension_semantics=("parallel", "arbitrary"),
            vmem_limit_bytes=vmem_limit),
    )(x_tm, w_ih_p, w_hh_p, b_p)

    h_last = h_pad[:B, :H]
    # fc head (H -> O, O=1) + sigmoid stays in the wrapper: an O=1 output
    # inside the kernel would be a fully-masked, lane-sparse store.
    return jax.nn.sigmoid(h_last @ jnp.transpose(w_fc) + b_fc)


def _lstm_reference(x, params):
    """Pure-JAX reference matching PyTorch LSTM + Linear + Sigmoid semantics."""
    w_ih, w_hh = params["w_ih"], params["w_hh"]
    b = params["b_ih"] + params["b_hh"]
    w_fc, b_fc = params["w_fc"], params["b_fc"]
    H = w_hh.shape[1]
    B, T, _ = x.shape
    h = jnp.zeros((B, H), jnp.float32)
    c = jnp.zeros((B, H), jnp.float32)
    for t in range(T):
        gates = x[:, t, :] @ w_ih.T + b + h @ w_hh.T
        i_g = jax.nn.sigmoid(gates[:, 0 * H:1 * H])
        f_g = jax.nn.sigmoid(gates[:, 1 * H:2 * H])
        g_g = jnp.tanh(gates[:, 2 * H:3 * H])
        o_g = jax.nn.sigmoid(gates[:, 3 * H:4 * H])
        c = f_g * c + i_g * g_g
        h = o_g * jnp.tanh(c)
    return jax.nn.sigmoid(h @ w_fc.T + b_fc)


def init_params(key, input_size, hidden_size, output_size):
    """Deterministic init mirroring PyTorch shapes (uniform +-1/sqrt(H))."""
    H = hidden_size
    k = 1.0 / jnp.sqrt(jnp.float32(H))
    keys = jax.random.split(key, 6)
    uni = lambda kk, shape: jax.random.uniform(
        kk, shape, dtype=jnp.float32, minval=-k, maxval=k)
    return {
        "w_ih": uni(keys[0], (4 * H, input_size)),
        "w_hh": uni(keys[1], (4 * H, H)),
        "b_ih": uni(keys[2], (4 * H,)),
        "b_hh": uni(keys[3], (4 * H,)),
        "w_fc": uni(keys[4], (output_size, H)),
        "b_fc": uni(keys[5], (output_size,)),
    }


if __name__ == "__main__":
    # Small shapes: batch=2, seq=8, input_size=16, hidden_size=32, output_size=1
    B, T, I, H, O = 2, 8, 16, 32, 1
    key = jax.random.PRNGKey(0)
    k_x, k_p = jax.random.split(key)
    x = jax.random.normal(k_x, (B, T, I), dtype=jnp.float32)
    params = init_params(k_p, I, H, O)

    fwd = jax.jit(lstm_model_forward)                     # default bf16 MXU path
    out = jax.block_until_ready(fwd(x, params))
    assert out.shape == (B, O)

    # Correctness: f32-MXU kernel vs. pure-JAX reference (tight), bf16 (loose).
    fwd_f32 = jax.jit(functools.partial(lstm_model_forward,
                                        mxu_dtype=jnp.float32))
    out_f32 = jax.block_until_ready(fwd_f32(x, params))
    ref = _lstm_reference(x, params)
    assert jnp.allclose(out_f32, ref, atol=1e-4, rtol=1e-4), "f32 path mismatch"
    assert jnp.allclose(out, ref, atol=5e-2, rtol=5e-2), "bf16 path mismatch"

    print("KERNEL_OK")
</pallas_src>

<mosaic_0001>
module attributes {stable_mosaic.version = 11 : i64} {
  func.func @lstm_kernel(%arg0: i32, %arg1: i32, %arg2: memref<8x8x16xbf16, #tpu.memory_space<vmem>>, %arg3: memref<16x512xbf16, #tpu.memory_space<vmem>>, %arg4: memref<128x512xbf16, #tpu.memory_space<vmem>>, %arg5: memref<1x512xf32, #tpu.memory_space<vmem>>, %arg6: memref<8x128xf32, #tpu.memory_space<vmem>>, %arg7: memref<64x512xf32, #tpu.memory_space<vmem>>, %arg8: memref<8x128xf32, #tpu.memory_space<vmem>>, %arg9: memref<8x128xf32, #tpu.memory_space<vmem>>) attributes {dimension_semantics = [#tpu.dimension_semantics<parallel>, #tpu.dimension_semantics<arbitrary>], iteration_bounds = array<i64: 1, 1>, scalar_prefetch = 0 : i64, scratch_operands = 3 : i64, tpu.core_type = #tpu.core_type<tc>, window_params = [{transform_indices = @transform_0, window_bounds = array<i64: 8, 8, 16>}, {pipeline_mode = #tpu.pipeline_mode<synchronous>, transform_indices = @transform_1, window_bounds = array<i64: 16, 512>}, {pipeline_mode = #tpu.pipeline_mode<synchronous>, transform_indices = @transform_2, window_bounds = array<i64: 128, 512>}, {pipeline_mode = #tpu.pipeline_mode<synchronous>, transform_indices = @transform_3, window_bounds = array<i64: 1, 512>}, {transform_indices = @transform_4, window_bounds = array<i64: 8, 128>}]} {
    %c0_i32 = arith.constant 0 : i32
    %0 = arith.cmpi eq, %arg1, %c0_i32 : i32
    %1 = arith.extui %0 : i1 to i32
    %c0_i32_0 = arith.constant 0 : i32
    %2 = arith.cmpi ne, %1, %c0_i32_0 : i32
    scf.if %2 {
      %cst_118 = arith.constant 0.000000e+00 : f32
      %323 = vector.broadcast %cst_118 : f32 to vector<8x128xf32>
      %c0_119 = arith.constant 0 : index
      %c0_120 = arith.constant 0 : index
      %324 = vector.load %arg8[%c0_119, %c0_120] : memref<8x128xf32, #tpu.memory_space<vmem>>, vector<8x128xf32>
      tpu.vector_store %arg8[%c0_119, %c0_120], %323 {strides = array<i32>} : memref<8x128xf32, #tpu.memory_space<vmem>>, vector<8x128xf32>,
      %cst_121 = arith.constant 0.000000e+00 : f32
      %325 = vector.broadcast %cst_121 : f32 to vector<8x128xf32>
      %c0_122 = arith.constant 0 : index
      %c0_123 = arith.constant 0 : index
      %326 = vector.load %arg9[%c0_122, %c0_123] : memref<8x128xf32, #tpu.memory_space<vmem>>, vector<8x128xf32>
      tpu.vector_store %arg9[%c0_122, %c0_123], %325 {strides = array<i32>} : memref<8x128xf32, #tpu.memory_space<vmem>>, vector<8x128xf32>,
    } else {
    }
    %c0 = arith.constant 0 : index
    %c0_1 = arith.constant 0 : index
    %c0_2 = arith.constant 0 : index
    %3 = vector.load %arg2[%c0, %c0_1, %c0_2] : memref<8x8x16xbf16, #tpu.memory_space<vmem>>, vector<8x8x16xbf16>
    %4 = vector.shape_cast %3 : vector<8x8x16xbf16> to vector<64x16xbf16>
    %c0_3 = arith.constant 0 : index
    %c0_4 = arith.constant 0 : index
    %5 = vector.load %arg3[%c0_3, %c0_4] : memref<16x512xbf16, #tpu.memory_space<vmem>>, vector<16x512xbf16>
    %cst = arith.constant dense<0.000000e+00> : vector<64x512xf32>
    %6 = tpu.matmul %4, %5, %cst {dimension_numbers = #tpu.dot_dimension_numbers<[1], [0], [0], [1], [0, 0, 1, 1], [], []>} : vector<64x16xbf16>, vector<16x512xbf16>, vector<64x512xf32> -> vector<64x512xf32>
    %c0_5 = arith.constant 0 : index
    %c0_6 = arith.constant 0 : index
    %7 = vector.load %arg5[%c0_5, %c0_6] : memref<1x512xf32, #tpu.memory_space<vmem>>, vector<1x512xf32>
    %8 = vector.broadcast %7 : vector<1x512xf32> to vector<64x512xf32>
    %9 = arith.addf %6, %8 : vector<64x512xf32>
    %c0_7 = arith.constant 0 : index
    %c0_8 = arith.constant 0 : index
    %10 = vector.load %arg7[%c0_7, %c0_8] : memref<64x512xf32, #tpu.memory_space<vmem>>, vector<64x512xf32>
    tpu.vector_store %arg7[%c0_7, %c0_8], %9 {strides = array<i32>} : memref<64x512xf32, #tpu.memory_space<vmem>>, vector<64x512xf32>,
    %c0_9 = arith.constant 0 : index
    %c0_10 = arith.constant 0 : index
    %11 = vector.load %arg4[%c0_9, %c0_10] : memref<128x512xbf16, #tpu.memory_space<vmem>>, vector<128x512xbf16>
    %c0_11 = arith.constant 0 : index
    %c0_12 = arith.constant 0 : index
    %12 = vector.load %arg8[%c0_11, %c0_12] : memref<8x128xf32, #tpu.memory_space<vmem>>, vector<8x128xf32>
    %c0_13 = arith.constant 0 : index
    %c0_14 = arith.constant 0 : index
    %13 = vector.load %arg9[%c0_13, %c0_14] : memref<8x128xf32, #tpu.memory_space<vmem>>, vector<8x128xf32>
    %c0_i32_15 = arith.constant 0 : i32
    %c8_i32 = arith.constant 8 : i32
    %14 = arith.muli %c0_i32_15, %c8_i32 : i32
    %15 = tpu.assume_multiple %14, 8 : i32
    %16 = arith.index_cast %15 : i32 to index
    %c0_16 = arith.constant 0 : index
    %17 = vector.load %arg7[%16, %c0_16] : memref<64x512xf32, #tpu.memory_space<vmem>>, vector<8x512xf32>
    %18 = arith.truncf %12 : vector<8x128xf32> to vector<8x128xbf16>
    %cst_17 = arith.constant dense<0.000000e+00> : vector<8x512xf32>
    %19 = tpu.matmul %18, %11, %cst_17 {dimension_numbers = #tpu.dot_dimension_numbers<[1], [0], [0], [1], [0, 0, 1, 1], [], []>} : vector<8x128xbf16>, vector<128x512xbf16>, vector<8x512xf32> -> vector<8x512xf32>
    %20 = arith.addf %17, %19 : vector<8x512xf32>
    %21 = vector.extract_strided_slice %20 {offsets = [0, 0], sizes = [8, 128], strides = [1, 1]} : vector<8x512xf32> to vector<8x128xf32>
    %cst_18 = arith.constant 5.000000e-01 : f32
    %22 = vector.broadcast %cst_18 : f32 to vector<8x128xf32>
    %23 = arith.mulf %22, %21 : vector<8x128xf32>
    %24 = math.tanh %23 : vector<8x128xf32>
    %cst_19 = arith.constant 5.000000e-01 : f32
    %25 = vector.broadcast %cst_19 : f32 to vector<8x128xf32>
    %26 = arith.mulf %25, %24 : vector<8x128xf32>
    %cst_20 = arith.constant 5.000000e-01 : f32
    %27 = vector.broadcast %cst_20 : f32 to vector<8x128xf32>
    %28 = arith.addf %26, %27 : vector<8x128xf32>
    %29 = vector.extract_strided_slice %20 {offsets = [0, 128], sizes = [8, 128], strides = [1, 1]} : vector<8x512xf32> to vector<8x128xf32>
    %cst_21 = arith.constant 5.000000e-01 : f32
    %30 = vector.broadcast %cst_21 : f32 to vector<8x128xf32>
    %31 = arith.mulf %30, %29 : vector<8x128xf32>
    %32 = math.tanh %31 : vector<8x128xf32>
    %cst_22 = arith.constant 5.000000e-01 : f32
    %33 = vector.broadcast %cst_22 : f32 to vector<8x128xf32>
    %34 = arith.mulf %33, %32 : vector<8x128xf32>
    %cst_23 = arith.constant 5.000000e-01 : f32
    %35 = vector.broadcast %cst_23 : f32 to vector<8x128xf32>
    %36 = arith.addf %34, %35 : vector<8x128xf32>
    %37 = vector.extract_strided_slice %20 {offsets = [0, 256], sizes = [8, 128], strides = [1, 1]} : vector<8x512xf32> to vector<8x128xf32>
    %38 = math.tanh %37 : vector<8x128xf32>
    %39 = vector.extract_strided_slice %20 {offsets = [0, 384], sizes = [8, 128], strides = [1, 1]} : vector<8x512xf32> to vector<8x128xf32>
    %cst_24 = arith.constant 5.000000e-01 : f32
    %40 = vector.broadcast %cst_24 : f32 to vector<8x128xf32>
    %41 = arith.mulf %40, %39 : vector<8x128xf32>
    %42 = math.tanh %41 : vector<8x128xf32>
    %cst_25 = arith.constant 5.000000e-01 : f32
    %43 = vector.broadcast %cst_25 : f32 to vector<8x128xf32>
    %44 = arith.mulf %43, %42 : vector<8x128xf32>
    %cst_26 = arith.constant 5.000000e-01 : f32
    %45 = vector.broadcast %cst_26 : f32 to vector<8x128xf32>
    %46 = arith.addf %44, %45 : vector<8x128xf32>
    %47 = arith.mulf %36, %13 : vector<8x128xf32>
    %48 = arith.mulf %28, %38 : vector<8x128xf32>
    %49 = arith.addf %47, %48 : vector<8x128xf32>
    %50 = math.tanh %49 : vector<8x128xf32>
    %51 = arith.mulf %46, %50 : vector<8x128xf32>
    %c1_i32 = arith.constant 1 : i32
    %c8_i32_27 = arith.constant 8 : i32
    %52 = arith.muli %c1_i32, %c8_i32_27 : i32
    %53 = tpu.assume_multiple %52, 8 : i32
    %54 = arith.index_cast %53 : i32 to index
    %c0_28 = arith.constant 0 : index
    %55 = vector.load %arg7[%54, %c0_28] : memref<64x512xf32, #tpu.memory_space<vmem>>, vector<8x512xf32>
    %56 = arith.truncf %51 : vector<8x128xf32> to vector<8x128xbf16>
    %cst_29 = arith.constant dense<0.000000e+00> : vector<8x512xf32>
    %57 = tpu.matmul %56, %11, %cst_29 {dimension_numbers = #tpu.dot_dimension_numbers<[1], [0], [0], [1], [0, 0, 1, 1], [], []>} : vector<8x128xbf16>, vector<128x512xbf16>, vector<8x512xf32> -> vector<8x512xf32>
    %58 = arith.addf %55, %57 : vector<8x512xf32>
    %59 = vector.extract_strided_slice %58 {offsets = [0, 0], sizes = [8, 128], strides = [1, 1]} : vector<8x512xf32> to vector<8x128xf32>
    %cst_30 = arith.constant 5.000000e-01 : f32
    %60 = vector.broadcast %cst_30 : f32 to vector<8x128xf32>
    %61 = arith.mulf %60, %59 : vector<8x128xf32>
    %62 = math.tanh %61 : vector<8x128xf32>
    %cst_31 = arith.constant 5.000000e-01 : f32
    %63 = vector.broadcast %cst_31 : f32 to vector<8x128xf32>
    %64 = arith.mulf %63, %62 : vector<8x128xf32>
    %cst_32 = arith.constant 5.000000e-01 : f32
    %65 = vector.broadcast %cst_32 : f32 to vector<8x128xf32>
    %66 = arith.addf %64, %65 : vector<8x128xf32>
    %67 = vector.extract_strided_slice %58 {offsets = [0, 128], sizes = [8, 128], strides = [1, 1]} : vector<8x512xf32> to vector<8x128xf32>
    %cst_33 = arith.constant 5.000000e-01 : f32
    %68 = vector.broadcast %cst_33 : f32 to vector<8x128xf32>
    %69 = arith.mulf %68, %67 : vector<8x128xf32>
    %70 = math.tanh %69 : vector<8x128xf32>
    %cst_34 = arith.constant 5.000000e-01 : f32
    %71 = vector.broadcast %cst_34 : f32 to vector<8x128xf32>
    %72 = arith.mulf %71, %70 : vector<8x128xf32>
    %cst_35 = arith.constant 5.000000e-01 : f32
    %73 = vector.broadcast %cst_35 : f32 to vector<8x128xf32>
    %74 = arith.addf %72, %73 : vector<8x128xf32>
    %75 = vector.extract_strided_slice %58 {offsets = [0, 256], sizes = [8, 128], strides = [1, 1]} : vector<8x512xf32> to vector<8x128xf32>
    %76 = math.tanh %75 : vector<8x128xf32>
    %77 = vector.extract_strided_slice %58 {offsets = [0, 384], sizes = [8, 128], strides = [1, 1]} : vector<8x512xf32> to vector<8x128xf32>
    %cst_36 = arith.constant 5.000000e-01 : f32
    %78 = vector.broadcast %cst_36 : f32 to vector<8x128xf32>
    %79 = arith.mulf %78, %77 : vector<8x128xf32>
    %80 = math.tanh %79 : vector<8x128xf32>
    %cst_37 = arith.constant 5.000000e-01 : f32
    %81 = vector.broadcast %cst_37 : f32 to vector<8x128xf32>
    %82 = arith.mulf %81, %80 : vector<8x128xf32>
    %cst_38 = arith.constant 5.000000e-01 : f32
    %83 = vector.broadcast %cst_38 : f32 to vector<8x128xf32>
    %84 = arith.addf %82, %83 : vector<8x128xf32>
    %85 = arith.mulf %74, %49 : vector<8x128xf32>
    %86 = arith.mulf %66, %76 : vector<8x128xf32>
    %87 = arith.addf %85, %86 : vector<8x128xf32>
    %88 = math.tanh %87 : vector<8x128xf32>
    %89 = arith.mulf %84, %88 : vector<8x128xf32>
    %c2_i32 = arith.constant 2 : i32
    %c8_i32_39 = arith.constant 8 : i32
    %90 = arith.muli %c2_i32, %c8_i32_39 : i32
    %91 = tpu.assume_multiple %90, 8 : i32
    %92 = arith.index_cast %91 : i32 to index
    %c0_40 = arith.constant 0 : index
    %93 = vector.load %arg7[%92, %c0_40] : memref<64x512xf32, #tpu.memory_space<vmem>>, vector<8x512xf32>
    %94 = arith.truncf %89 : vector<8x128xf32> to vector<8x128xbf16>
    %cst_41 = arith.constant dense<0.000000e+00> : vector<8x512xf32>
    %95 = tpu.matmul %94, %11, %cst_41 {dimension_numbers = #tpu.dot_dimension_numbers<[1], [0], [0], [1], [0, 0, 1, 1], [], []>} : vector<8x128xbf16>, vector<128x512xbf16>, vector<8x512xf32> -> vector<8x512xf32>
    %96 = arith.addf %93, %95 : vector<8x512xf32>
    %97 = vector.extract_strided_slice %96 {offsets = [0, 0], sizes = [8, 128], strides = [1, 1]} : vector<8x512xf32> to vector<8x128xf32>
    %cst_42 = arith.constant 5.000000e-01 : f32
    %98 = vector.broadcast %cst_42 : f32 to vector<8x128xf32>
    %99 = arith.mulf %98, %97 : vector<8x128xf32>
    %100 = math.tanh %99 : vector<8x128xf32>
    %cst_43 = arith.constant 5.000000e-01 : f32
    %101 = vector.broadcast %cst_43 : f32 to vector<8x128xf32>
    %102 = arith.mulf %101, %100 : vector<8x128xf32>
    %cst_44 = arith.constant 5.000000e-01 : f32
    %103 = vector.broadcast %cst_44 : f32 to vector<8x128xf32>
    %104 = arith.addf %102, %103 : vector<8x128xf32>
    %105 = vector.extract_strided_slice %96 {offsets = [0, 128], sizes = [8, 128], strides = [1, 1]} : vector<8x512xf32> to vector<8x128xf32>
    %cst_45 = arith.constant 5.000000e-01 : f32
    %106 = vector.broadcast %cst_45 : f32 to vector<8x128xf32>
    %107 = arith.mulf %106, %105 : vector<8x128xf32>
    %108 = math.tanh %107 : vector<8x128xf32>
    %cst_46 = arith.constant 5.000000e-01 : f32
    %109 = vector.broadcast %cst_46 : f32 to vector<8x128xf32>
    %110 = arith.mulf %109, %108 : vector<8x128xf32>
    %cst_47 = arith.constant 5.000000e-01 : f32
    %111 = vector.broadcast %cst_47 : f32 to vector<8x128xf32>
    %112 = arith.addf %110, %111 : vector<8x128xf32>
    %113 = vector.extract_strided_slice %96 {offsets = [0, 256], sizes = [8, 128], strides = [1, 1]} : vector<8x512xf32> to vector<8x128xf32>
    %114 = math.tanh %113 : vector<8x128xf32>
    %115 = vector.extract_strided_slice %96 {offsets = [0, 384], sizes = [8, 128], strides = [1, 1]} : vector<8x512xf32> to vector<8x128xf32>
    %cst_48 = arith.constant 5.000000e-01 : f32
    %116 = vector.broadcast %cst_48 : f32 to vector<8x128xf32>
    %117 = arith.mulf %116, %115 : vector<8x128xf32>
    %118 = math.tanh %117 : vector<8x128xf32>
    %cst_49 = arith.constant 5.000000e-01 : f32
    %119 = vector.broadcast %cst_49 : f32 to vector<8x128xf32>
    %120 = arith.mulf %119, %118 : vector<8x128xf32>
    %cst_50 = arith.constant 5.000000e-01 : f32
    %121 = vector.broadcast %cst_50 : f32 to vector<8x128xf32>
    %122 = arith.addf %120, %121 : vector<8x128xf32>
    %123 = arith.mulf %112, %87 : vector<8x128xf32>
    %124 = arith.mulf %104, %114 : vector<8x128xf32>
    %125 = arith.addf %123, %124 : vector<8x128xf32>
    %126 = math.tanh %125 : vector<8x128xf32>
    %127 = arith.mulf %122, %126 : vector<8x128xf32>
    %c3_i32 = arith.constant 3 : i32
    %c8_i32_51 = arith.constant 8 : i32
    %128 = arith.muli %c3_i32, %c8_i32_51 : i32
    %129 = tpu.assume_multiple %128, 8 : i32
    %130 = arith.index_cast %129 : i32 to index
    %c0_52 = arith.constant 0 : index
    %131 = vector.load %arg7[%130, %c0_52] : memref<64x512xf32, #tpu.memory_space<vmem>>, vector<8x512xf32>
    %132 = arith.truncf %127 : vector<8x128xf32> to vector<8x128xbf16>
    %cst_53 = arith.constant dense<0.000000e+00> : vector<8x512xf32>
    %133 = tpu.matmul %132, %11, %cst_53 {dimension_numbers = #tpu.dot_dimension_numbers<[1], [0], [0], [1], [0, 0, 1, 1], [], []>} : vector<8x128xbf16>, vector<128x512xbf16>, vector<8x512xf32> -> vector<8x512xf32>
    %134 = arith.addf %131, %133 : vector<8x512xf32>
    %135 = vector.extract_strided_slice %134 {offsets = [0, 0], sizes = [8, 128], strides = [1, 1]} : vector<8x512xf32> to vector<8x128xf32>
    %cst_54 = arith.constant 5.000000e-01 : f32
    %136 = vector.broadcast %cst_54 : f32 to vector<8x128xf32>
    %137 = arith.mulf %136, %135 : vector<8x128xf32>
    %138 = math.tanh %137 : vector<8x128xf32>
    %cst_55 = arith.constant 5.000000e-01 : f32
    %139 = vector.broadcast %cst_55 : f32 to vector<8x128xf32>
    %140 = arith.mulf %139, %138 : vector<8x128xf32>
    %cst_56 = arith.constant 5.000000e-01 : f32
    %141 = vector.broadcast %cst_56 : f32 to vector<8x128xf32>
    %142 = arith.addf %140, %141 : vector<8x128xf32>
    %143 = vector.extract_strided_slice %134 {offsets = [0, 128], sizes = [8, 128], strides = [1, 1]} : vector<8x512xf32> to vector<8x128xf32>
    %cst_57 = arith.constant 5.000000e-01 : f32
    %144 = vector.broadcast %cst_57 : f32 to vector<8x128xf32>
    %145 = arith.mulf %144, %143 : vector<8x128xf32>
    %146 = math.tanh %145 : vector<8x128xf32>
    %cst_58 = arith.constant 5.000000e-01 : f32
    %147 = vector.broadcast %cst_58 : f32 to vector<8x128xf32>
    %148 = arith.mulf %147, %146 : vector<8x128xf32>
    %cst_59 = arith.constant 5.000000e-01 : f32
    %149 = vector.broadcast %cst_59 : f32 to vector<8x128xf32>
    %150 = arith.addf %148, %149 : vector<8x128xf32>
    %151 = vector.extract_strided_slice %134 {offsets = [0, 256], sizes = [8, 128], strides = [1, 1]} : vector<8x512xf32> to vector<8x128xf32>
    %152 = math.tanh %151 : vector<8x128xf32>
    %153 = vector.extract_strided_slice %134 {offsets = [0, 384], sizes = [8, 128], strides = [1, 1]} : vector<8x512xf32> to vector<8x128xf32>
    %cst_60 = arith.constant 5.000000e-01 : f32
    %154 = vector.broadcast %cst_60 : f32 to vector<8x128xf32>
    %155 = arith.mulf %154, %153 : vector<8x128xf32>
    %156 = math.tanh %155 : vector<8x128xf32>
    %cst_61 = arith.constant 5.000000e-01 : f32
    %157 = vector.broadcast %cst_61 : f32 to vector<8x128xf32>
    %158 = arith.mulf %157, %156 : vector<8x128xf32>
    %cst_62 = arith.constant 5.000000e-01 : f32
    %159 = vector.broadcast %cst_62 : f32 to vector<8x128xf32>
    %160 = arith.addf %158, %159 : vector<8x128xf32>
    %161 = arith.mulf %150, %125 : vector<8x128xf32>
    %162 = arith.mulf %142, %152 : vector<8x128xf32>
    %163 = arith.addf %161, %162 : vector<8x128xf32>
    %164 = math.tanh %163 : vector<8x128xf32>
    %165 = arith.mulf %160, %164 : vector<8x128xf32>
    %c4_i32 = arith.constant 4 : i32
    %c8_i32_63 = arith.constant 8 : i32
    %166 = arith.muli %c4_i32, %c8_i32_63 : i32
    %167 = tpu.assume_multiple %166, 8 : i32
    %168 = arith.index_cast %167 : i32 to index
    %c0_64 = arith.constant 0 : index
    %169 = vector.load %arg7[%168, %c0_64] : memref<64x512xf32, #tpu.memory_space<vmem>>, vector<8x512xf32>
    %170 = arith.truncf %165 : vector<8x128xf32> to vector<8x128xbf16>
    %cst_65 = arith.constant dense<0.000000e+00> : vector<8x512xf32>
    %171 = tpu.matmul %170, %11, %cst_65 {dimension_numbers = #tpu.dot_dimension_numbers<[1], [0], [0], [1], [0, 0, 1, 1], [], []>} : vector<8x128xbf16>, vector<128x512xbf16>, vector<8x512xf32> -> vector<8x512xf32>
    %172 = arith.addf %169, %171 : vector<8x512xf32>
    %173 = vector.extract_strided_slice %172 {offsets = [0, 0], sizes = [8, 128], strides = [1, 1]} : vector<8x512xf32> to vector<8x128xf32>
    %cst_66 = arith.constant 5.000000e-01 : f32
    %174 = vector.broadcast %cst_66 : f32 to vector<8x128xf32>
    %175 = arith.mulf %174, %173 : vector<8x128xf32>
    %176 = math.tanh %175 : vector<8x128xf32>
    %cst_67 = arith.constant 5.000000e-01 : f32
    %177 = vector.broadcast %cst_67 : f32 to vector<8x128xf32>
    %178 = arith.mulf %177, %176 : vector<8x128xf32>
    %cst_68 = arith.constant 5.000000e-01 : f32
    %179 = vector.broadcast %cst_68 : f32 to vector<8x128xf32>
    %180 = arith.addf %178, %179 : vector<8x128xf32>
    %181 = vector.extract_strided_slice %172 {offsets = [0, 128], sizes = [8, 128], strides = [1, 1]} : vector<8x512xf32> to vector<8x128xf32>
    %cst_69 = arith.constant 5.000000e-01 : f32
    %182 = vector.broadcast %cst_69 : f32 to vector<8x128xf32>
    %183 = arith.mulf %182, %181 : vector<8x128xf32>
    %184 = math.tanh %183 : vector<8x128xf32>
    %cst_70 = arith.constant 5.000000e-01 : f32
    %185 = vector.broadcast %cst_70 : f32 to vector<8x128xf32>
    %186 = arith.mulf %185, %184 : vector<8x128xf32>
    %cst_71 = arith.constant 5.000000e-01 : f32
    %187 = vector.broadcast %cst_71 : f32 to vector<8x128xf32>
    %188 = arith.addf %186, %187 : vector<8x128xf32>
    %189 = vector.extract_strided_slice %172 {offsets = [0, 256], sizes = [8, 128], strides = [1, 1]} : vector<8x512xf32> to vector<8x128xf32>
    %190 = math.tanh %189 : vector<8x128xf32>
    %191 = vector.extract_strided_slice %172 {offsets = [0, 384], sizes = [8, 128], strides = [1, 1]} : vector<8x512xf32> to vector<8x128xf32>
    %cst_72 = arith.constant 5.000000e-01 : f32
    %192 = vector.broadcast %cst_72 : f32 to vector<8x128xf32>
    %193 = arith.mulf %192, %191 : vector<8x128xf32>
    %194 = math.tanh %193 : vector<8x128xf32>
    %cst_73 = arith.constant 5.000000e-01 : f32
    %195 = vector.broadcast %cst_73 : f32 to vector<8x128xf32>
    %196 = arith.mulf %195, %194 : vector<8x128xf32>
    %cst_74 = arith.constant 5.000000e-01 : f32
    %197 = vector.broadcast %cst_74 : f32 to vector<8x128xf32>
    %198 = arith.addf %196, %197 : vector<8x128xf32>
    %199 = arith.mulf %188, %163 : vector<8x128xf32>
    %200 = arith.mulf %180, %190 : vector<8x128xf32>
    %201 = arith.addf %199, %200 : vector<8x128xf32>
    %202 = math.tanh %201 : vector<8x128xf32>
    %203 = arith.mulf %198, %202 : vector<8x128xf32>
    %c5_i32 = arith.constant 5 : i32
    %c8_i32_75 = arith.constant 8 : i32
    %204 = arith.muli %c5_i32, %c8_i32_75 : i32
    %205 = tpu.assume_multiple %204, 8 : i32
    %206 = arith.index_cast %205 : i32 to index
    %c0_76 = arith.constant 0 : index
    %207 = vector.load %arg7[%206, %c0_76] : memref<64x512xf32, #tpu.memory_space<vmem>>, vector<8x512xf32>
    %208 = arith.truncf %203 : vector<8x128xf32> to vector<8x128xbf16>
    %cst_77 = arith.constant dense<0.000000e+00> : vector<8x512xf32>
    %209 = tpu.matmul %208, %11, %cst_77 {dimension_numbers = #tpu.dot_dimension_numbers<[1], [0], [0], [1], [0, 0, 1, 1], [], []>} : vector<8x128xbf16>, vector<128x512xbf16>, vector<8x512xf32> -> vector<8x512xf32>
    %210 = arith.addf %207, %209 : vector<8x512xf32>
    %211 = vector.extract_strided_slice %210 {offsets = [0, 0], sizes = [8, 128], strides = [1, 1]} : vector<8x512xf32> to vector<8x128xf32>
    %cst_78 = arith.constant 5.000000e-01 : f32
    %212 = vector.broadcast %cst_78 : f32 to vector<8x128xf32>
    %213 = arith.mulf %212, %211 : vector<8x128xf32>
    %214 = math.tanh %213 : vector<8x128xf32>
    %cst_79 = arith.constant 5.000000e-01 : f32
    %215 = vector.broadcast %cst_79 : f32 to vector<8x128xf32>
    %216 = arith.mulf %215, %214 : vector<8x128xf32>
    %cst_80 = arith.constant 5.000000e-01 : f32
    %217 = vector.broadcast %cst_80 : f32 to vector<8x128xf32>
    %218 = arith.addf %216, %217 : vector<8x128xf32>
    %219 = vector.extract_strided_slice %210 {offsets = [0, 128], sizes = [8, 128], strides = [1, 1]} : vector<8x512xf32> to vector<8x128xf32>
    %cst_81 = arith.constant 5.000000e-01 : f32
    %220 = vector.broadcast %cst_81 : f32 to vector<8x128xf32>
    %221 = arith.mulf %220, %219 : vector<8x128xf32>
    %222 = math.tanh %221 : vector<8x128xf32>
    %cst_82 = arith.constant 5.000000e-01 : f32
    %223 = vector.broadcast %cst_82 : f32 to vector<8x128xf32>
    %224 = arith.mulf %223, %222 : vector<8x128xf32>
    %cst_83 = arith.constant 5.000000e-01 : f32
    %225 = vector.broadcast %cst_83 : f32 to vector<8x128xf32>
    %226 = arith.addf %224, %225 : vector<8x128xf32>
    %227 = vector.extract_strided_slice %210 {offsets = [0, 256], sizes = [8, 128], strides = [1, 1]} : vector<8x512xf32> to vector<8x128xf32>
    %228 = math.tanh %227 : vector<8x128xf32>
    %229 = vector.extract_strided_slice %210 {offsets = [0, 384], sizes = [8, 128], strides = [1, 1]} : vector<8x512xf32> to vector<8x128xf32>
    %cst_84 = arith.constant 5.000000e-01 : f32
    %230 = vector.broadcast %cst_84 : f32 to vector<8x128xf32>
    %231 = arith.mulf %230, %229 : vector<8x128xf32>
    %232 = math.tanh %231 : vector<8x128xf32>
    %cst_85 = arith.constant 5.000000e-01 : f32
    %233 = vector.broadcast %cst_85 : f32 to vector<8x128xf32>
    %234 = arith.mulf %233, %232 : vector<8x128xf32>
    %cst_86 = arith.constant 5.000000e-01 : f32
    %235 = vector.broadcast %cst_86 : f32 to vector<8x128xf32>
    %236 = arith.addf %234, %235 : vector<8x128xf32>
    %237 = arith.mulf %226, %201 : vector<8x128xf32>
    %238 = arith.mulf %218, %228 : vector<8x128xf32>
    %239 = arith.addf %237, %238 : vector<8x128xf32>
    %240 = math.tanh %239 : vector<8x128xf32>
    %241 = arith.mulf %236, %240 : vector<8x128xf32>
    %c6_i32 = arith.constant 6 : i32
    %c8_i32_87 = arith.constant 8 : i32
    %242 = arith.muli %c6_i32, %c8_i32_87 : i32
    %243 = tpu.assume_multiple %242, 8 : i32
    %244 = arith.index_cast %243 : i32 to index
    %c0_88 = arith.constant 0 : index
    %245 = vector.load %arg7[%244, %c0_88] : memref<64x512xf32, #tpu.memory_space<vmem>>, vector<8x512xf32>
    %246 = arith.truncf %241 : vector<8x128xf32> to vector<8x128xbf16>
    %cst_89 = arith.constant dense<0.000000e+00> : vector<8x512xf32>
    %247 = tpu.matmul %246, %11, %cst_89 {dimension_numbers = #tpu.dot_dimension_numbers<[1], [0], [0], [1], [0, 0, 1, 1], [], []>} : vector<8x128xbf16>, vector<128x512xbf16>, vector<8x512xf32> -> vector<8x512xf32>
    %248 = arith.addf %245, %247 : vector<8x512xf32>
    %249 = vector.extract_strided_slice %248 {offsets = [0, 0], sizes = [8, 128], strides = [1, 1]} : vector<8x512xf32> to vector<8x128xf32>
    %cst_90 = arith.constant 5.000000e-01 : f32
    %250 = vector.broadcast %cst_90 : f32 to vector<8x128xf32>
    %251 = arith.mulf %250, %249 : vector<8x128xf32>
    %252 = math.tanh %251 : vector<8x128xf32>
    %cst_91 = arith.constant 5.000000e-01 : f32
    %253 = vector.broadcast %cst_91 : f32 to vector<8x128xf32>
    %254 = arith.mulf %253, %252 : vector<8x128xf32>
    %cst_92 = arith.constant 5.000000e-01 : f32
    %255 = vector.broadcast %cst_92 : f32 to vector<8x128xf32>
    %256 = arith.addf %254, %255 : vector<8x128xf32>
    %257 = vector.extract_strided_slice %248 {offsets = [0, 128], sizes = [8, 128], strides = [1, 1]} : vector<8x512xf32> to vector<8x128xf32>
    %cst_93 = arith.constant 5.000000e-01 : f32
    %258 = vector.broadcast %cst_93 : f32 to vector<8x128xf32>
    %259 = arith.mulf %258, %257 : vector<8x128xf32>
    %260 = math.tanh %259 : vector<8x128xf32>
    %cst_94 = arith.constant 5.000000e-01 : f32
    %261 = vector.broadcast %cst_94 : f32 to vector<8x128xf32>
    %262 = arith.mulf %261, %260 : vector<8x128xf32>
    %cst_95 = arith.constant 5.000000e-01 : f32
    %263 = vector.broadcast %cst_95 : f32 to vector<8x128xf32>
    %264 = arith.addf %262, %263 : vector<8x128xf32>
    %265 = vector.extract_strided_slice %248 {offsets = [0, 256], sizes = [8, 128], strides = [1, 1]} : vector<8x512xf32> to vector<8x128xf32>
    %266 = math.tanh %265 : vector<8x128xf32>
    %267 = vector.extract_strided_slice %248 {offsets = [0, 384], sizes = [8, 128], strides = [1, 1]} : vector<8x512xf32> to vector<8x128xf32>
    %cst_96 = arith.constant 5.000000e-01 : f32
    %268 = vector.broadcast %cst_96 : f32 to vector<8x128xf32>
    %269 = arith.mulf %268, %267 : vector<8x128xf32>
    %270 = math.tanh %269 : vector<8x128xf32>
    %cst_97 = arith.constant 5.000000e-01 : f32
    %271 = vector.broadcast %cst_97 : f32 to vector<8x128xf32>
    %272 = arith.mulf %271, %270 : vector<8x128xf32>
    %cst_98 = arith.constant 5.000000e-01 : f32
    %273 = vector.broadcast %cst_98 : f32 to vector<8x128xf32>
    %274 = arith.addf %272, %273 : vector<8x128xf32>
    %275 = arith.mulf %264, %239 : vector<8x128xf32>
    %276 = arith.mulf %256, %266 : vector<8x128xf32>
    %277 = arith.addf %275, %276 : vector<8x128xf32>
    %278 = math.tanh %277 : vector<8x128xf32>
    %279 = arith.mulf %274, %278 : vector<8x128xf32>
    %c7_i32 = arith.constant 7 : i32
    %c8_i32_99 = arith.constant 8 : i32
    %280 = arith.muli %c7_i32, %c8_i32_99 : i32
    %281 = tpu.assume_multiple %280, 8 : i32
    %282 = arith.index_cast %281 : i32 to index
    %c0_100 = arith.constant 0 : index
    %283 = vector.load %arg7[%282, %c0_100] : memref<64x512xf32, #tpu.memory_space<vmem>>, vector<8x512xf32>
    %284 = arith.truncf %279 : vector<8x128xf32> to vector<8x128xbf16>
    %cst_101 = arith.constant dense<0.000000e+00> : vector<8x512xf32>
    %285 = tpu.matmul %284, %11, %cst_101 {dimension_numbers = #tpu.dot_dimension_numbers<[1], [0], [0], [1], [0, 0, 1, 1], [], []>} : vector<8x128xbf16>, vector<128x512xbf16>, vector<8x512xf32> -> vector<8x512xf32>
    %286 = arith.addf %283, %285 : vector<8x512xf32>
    %287 = vector.extract_strided_slice %286 {offsets = [0, 0], sizes = [8, 128], strides = [1, 1]} : vector<8x512xf32> to vector<8x128xf32>
    %cst_102 = arith.constant 5.000000e-01 : f32
    %288 = vector.broadcast %cst_102 : f32 to vector<8x128xf32>
    %289 = arith.mulf %288, %287 : vector<8x128xf32>
    %290 = math.tanh %289 : vector<8x128xf32>
    %cst_103 = arith.constant 5.000000e-01 : f32
    %291 = vector.broadcast %cst_103 : f32 to vector<8x128xf32>
    %292 = arith.mulf %291, %290 : vector<8x128xf32>
    %cst_104 = arith.constant 5.000000e-01 : f32
    %293 = vector.broadcast %cst_104 : f32 to vector<8x128xf32>
    %294 = arith.addf %292, %293 : vector<8x128xf32>
    %295 = vector.extract_strided_slice %286 {offsets = [0, 128], sizes = [8, 128], strides = [1, 1]} : vector<8x512xf32> to vector<8x128xf32>
    %cst_105 = arith.constant 5.000000e-01 : f32
    %296 = vector.broadcast %cst_105 : f32 to vector<8x128xf32>
    %297 = arith.mulf %296, %295 : vector<8x128xf32>
    %298 = math.tanh %297 : vector<8x128xf32>
    %cst_106 = arith.constant 5.000000e-01 : f32
    %299 = vector.broadcast %cst_106 : f32 to vector<8x128xf32>
    %300 = arith.mulf %299, %298 : vector<8x128xf32>
    %cst_107 = arith.constant 5.000000e-01 : f32
    %301 = vector.broadcast %cst_107 : f32 to vector<8x128xf32>
    %302 = arith.addf %300, %301 : vector<8x128xf32>
    %303 = vector.extract_strided_slice %286 {offsets = [0, 256], sizes = [8, 128], strides = [1, 1]} : vector<8x512xf32> to vector<8x128xf32>
    %304 = math.tanh %303 : vector<8x128xf32>
    %305 = vector.extract_strided_slice %286 {offsets = [0, 384], sizes = [8, 128], strides = [1, 1]} : vector<8x512xf32> to vector<8x128xf32>
    %cst_108 = arith.constant 5.000000e-01 : f32
    %306 = vector.broadcast %cst_108 : f32 to vector<8x128xf32>
    %307 = arith.mulf %306, %305 : vector<8x128xf32>
    %308 = math.tanh %307 : vector<8x128xf32>
    %cst_109 = arith.constant 5.000000e-01 : f32
    %309 = vector.broadcast %cst_109 : f32 to vector<8x128xf32>
    %310 = arith.mulf %309, %308 : vector<8x128xf32>
    %cst_110 = arith.constant 5.000000e-01 : f32
    %311 = vector.broadcast %cst_110 : f32 to vector<8x128xf32>
    %312 = arith.addf %310, %311 : vector<8x128xf32>
    %313 = arith.mulf %302, %277 : vector<8x128xf32>
    %314 = arith.mulf %294, %304 : vector<8x128xf32>
    %315 = arith.addf %313, %314 : vector<8x128xf32>
    %316 = math.tanh %315 : vector<8x128xf32>
    %317 = arith.mulf %312, %316 : vector<8x128xf32>
    %c8_i32_111 = arith.constant 8 : i32
    %c0_112 = arith.constant 0 : index
    %c0_113 = arith.constant 0 : index
    %318 = vector.load %arg8[%c0_112, %c0_113] : memref<8x128xf32, #tpu.memory_space<vmem>>, vector<8x128xf32>
    tpu.vector_store %arg8[%c0_112, %c0_113], %317 {strides = array<i32>} : memref<8x128xf32, #tpu.memory_space<vmem>>, vector<8x128xf32>,
    %c0_114 = arith.constant 0 : index
    %c0_115 = arith.constant 0 : index
    %319 = vector.load %arg9[%c0_114, %c0_115] : memref<8x128xf32, #tpu.memory_space<vmem>>, vector<8x128xf32>
    tpu.vector_store %arg9[%c0_114, %c0_115], %315 {strides = array<i32>} : memref<8x128xf32, #tpu.memory_space<vmem>>, vector<8x128xf32>,
    %c0_i32_116 = arith.constant 0 : i32
    %320 = arith.cmpi eq, %arg1, %c0_i32_116 : i32
    %321 = arith.extui %320 : i1 to i32
    %c0_i32_117 = arith.constant 0 : i32
    %322 = arith.cmpi ne, %321, %c0_i32_117 : i32
    scf.if %322 {
      %c0_118 = arith.constant 0 : index
      %c0_119 = arith.constant 0 : index
      %323 = vector.load %arg6[%c0_118, %c0_119] : memref<8x128xf32, #tpu.memory_space<vmem>>, vector<8x128xf32>
      tpu.vector_store %arg6[%c0_118, %c0_119], %317 {strides = array<i32>} : memref<8x128xf32, #tpu.memory_space<vmem>>, vector<8x128xf32>,
    } else {
    }
    return
  }
  func.func @transform_0(%arg0: i32, %arg1: i32) -> (i32, i32, i32) {
    %c0_i32 = arith.constant 0 : i32
    %c0_i32_0 = arith.constant 0 : i32
    return %arg1, %arg0, %c0_i32 : i32, i32, i32
  }
  func.func @transform_1(%arg0: i32, %arg1: i32) -> (i32, i32) {
    %c0_i32 = arith.constant 0 : i32
    %c0_i32_0 = arith.constant 0 : i32
    %c0_i32_1 = arith.constant 0 : i32
    return %c0_i32, %c0_i32_0 : i32, i32
  }
  func.func @transform_2(%arg0: i32, %arg1: i32) -> (i32, i32) {
    %c0_i32 = arith.constant 0 : i32
    %c0_i32_0 = arith.constant 0 : i32
    %c0_i32_1 = arith.constant 0 : i32
    return %c0_i32, %c0_i32_0 : i32, i32
  }
  func.func @transform_3(%arg0: i32, %arg1: i32) -> (i32, i32) {
    %c0_i32 = arith.constant 0 : i32
    %c0_i32_0 = arith.constant 0 : i32
    %c0_i32_1 = arith.constant 0 : i32
    return %c0_i32, %c0_i32_0 : i32, i32
  }
  func.func @transform_4(%arg0: i32, %arg1: i32) -> (i32, i32) {
    %c0_i32 = arith.constant 0 : i32
    %c0_i32_0 = arith.constant 0 : i32
    return %arg0, %c0_i32 : i32, i32
  }
}

</mosaic_0001>

<llo_original>
// kernel: lstm_model_forward.1
$region0: #{lstm_model_forward.1}
  #allocation0 [shape = 'u32[]', space=smem, size = 0x4, offset = 0x4, fixed_abs, tag = 'smem constant byte address 0x4 - core index']
  #allocation1 [shape = 'u32[144,128]{1,0:T(1,128)}', space=vmem, size = 0x12000, scoped, tag = 'internal scratch']
  #allocation2 [shape = 'f32[64,512]{1,0:T(8,128)}', space=vmem, size = 0x20000, scoped, tag = 'scratch operand']
  #allocation3 [shape = 'f32[8,128]{1,0:T(8,128)}', space=vmem, size = 0x1000, scoped, tag = 'scratch operand']
  #allocation4 [shape = 'f32[8,128]{1,0:T(8,128)}', space=vmem, size = 0x1000, scoped, tag = 'scratch operand']
  %s0 = inlined_call_operand.vmem [shape: bf16[8,8,16], index: 0, kind: input, shape index: {}]
  %s1 = inlined_call_operand.vmem [shape: bf16[16,512], index: 1, kind: input, shape index: {}]
  %s2 = inlined_call_operand.vmem [shape: bf16[128,512], index: 2, kind: input, shape index: {}]
  %s3 = inlined_call_operand.vmem [shape: f32[1,512], index: 3, kind: input, shape index: {}]
  %s4 = inlined_call_operand.vmem [shape: f32[8,128], index: 4, kind: output, shape index: {}]
  %s5 = sld [smem:[#allocation0]]
  $region34: #{lstm_model_forward.1} parent=0
    _
  %s7 = ssub.s32 1, %s5
  %s8 = scalar_select 0, %s7, %s5
  // Predicated region
  $region2: #{lstm_model_forward.1} parent=0 // pred_check
    _
  $region3: #{lstm_model_forward.1} parent=0 // pred_check_branch
    %10 = sbr.rel (0) target = $region5
  $region4: #{lstm_model_forward.1} parent=0 // pred_region
    _
  $region5: #{lstm_model_forward.1} parent=0 // pred_fallthru
    _
  // Predicated region
  $region6: #{lstm_model_forward.1} parent=0 // pred_check
    _
  $region7: #{lstm_model_forward.1} parent=0 // pred_check_branch
    %12 = sbr.rel (0) target = $region9
  $region8: #{lstm_model_forward.1} parent=0 // pred_region
    _
  $region9: #{lstm_model_forward.1} parent=0 // pred_fallthru
    _
  // Predicated region
  $region10: #{lstm_model_forward.1} parent=0 // pred_check
    _
  $region11: #{lstm_model_forward.1} parent=0 // pred_check_branch
    %14 = sbr.rel (0) target = $region13
  $region12: #{lstm_model_forward.1} parent=0 // pred_region
    _
  $region13: #{lstm_model_forward.1} parent=0 // pred_fallthru
    _
  // Predicated region
  $region14: #{lstm_model_forward.1} parent=0 // pred_check
    _
  $region15: #{lstm_model_forward.1} parent=0 // pred_check_branch
    %16 = sbr.rel (0) target = $region17
  $region16: #{lstm_model_forward.1} parent=0 // pred_region
    _
  $region17: #{lstm_model_forward.1} parent=0 // pred_fallthru
    _
  %p18 = scmp.eq.s32.totalorder 0, 0
  // Predicated region
  $region18: #{lstm_model_forward.1} parent=0 // pred_check
    %p19 = pneg %p18
  $region19: #{lstm_model_forward.1} parent=0 // pred_check_branch
    %21 = sbr.rel (%p19) target = $region21
  $region20: #{lstm_model_forward.1} parent=0 // pred_region
    %22 = vst [vmem:[#allocation3] sm:$0xff] 0.0
    %23 = vst [vmem:[#allocation4] sm:$0xff] 0.0
  $region21: #{lstm_model_forward.1} parent=0 // pred_fallthru
    _
  %v24 = vld [vmem:[%s0] sm:$0xf]
  %v25 = vld [vmem:[%s0 + $0x4] sm:$0xf]
  %v26 = vld [vmem:[%s0 + $0x8] sm:$0xf]
  %v27 = vld [vmem:[%s0 + $0xc] sm:$0xf]
  %v28 = vld [vmem:[%s0 + $0x10] sm:$0xf]
  %v29 = vld [vmem:[%s0 + $0x14] sm:$0xf]
  %v30 = vld [vmem:[%s0 + $0x18] sm:$0xf]
  %v31 = vld [vmem:[%s0 + $0x1c] sm:$0xf]
  %v32 = vld [vmem:[%s1] sm:$0xff]
  %v33 = vld [vmem:[%s1 + $0x8] sm:$0xff]
  %v34 = vld [vmem:[%s1 + $0x10] sm:$0xff]
  %v35 = vld [vmem:[%s1 + $0x18] sm:$0xff]
  %v36 = vld [vmem:[%s3] sm:$0xf]
  %v38 = vlaneseq
  %v39 = vshrl.u32 %v38, 7
  %v40 = vsub.s32 0, %v39
  %v41 = vrot.slane %v36, %v40
  %v42 = vlaneseq
  %v43 = vshrl.u32 %v42, 7
  %v44 = vsub.s32 1, %v43
  %v45 = vrot.slane %v36, %v44
  %v46 = vlaneseq
  %v47 = vshrl.u32 %v46, 7
  %v48 = vsub.s32 2, %v47
  %v49 = vrot.slane %v36, %v48
  %v50 = vlaneseq
  %v51 = vshrl.u32 %v50, 7
  %v52 = vsub.s32 3, %v51
  %v53 = vrot.slane %v36, %v52
  %v66 = vunpack.c.l.b16 %v24
  %v67 = vunpack.c.l.b16 %v25
  %v68 = vunpack.c.l.b16 %v26
  %v69 = vunpack.c.l.b16 %v27
  %v70 = vunpack.c.l.b16 %v28
  %v71 = vunpack.c.l.b16 %v29
  %v72 = vunpack.c.l.b16 %v30
  %v73 = vunpack.c.l.b16 %v31
  %v74 = vpack.c.b16 %v67, %v66
  %v75 = vpack.c.b16 %v69, %v68
  %v76 = vpack.c.b16 %v71, %v70
  %v77 = vpack.c.b16 %v73, %v72
  %v82 = vunpack.c.l.b16 %v32
  %v83 = vunpack.c.h.b16 %v32
  %v84 = vunpack.c.l.b16 %v33
  %v85 = vunpack.c.h.b16 %v33
  %v86 = vunpack.c.l.b16 %v34
  %v87 = vunpack.c.h.b16 %v34
  %v88 = vunpack.c.l.b16 %v35
  %v89 = vunpack.c.h.b16 %v35
  %v90 = vpack.c.b16 %v86, %v82
  %v91 = vpack.c.b16 %v87, %v83
  %v92 = vpack.c.b16 %v88, %v84
  %v93 = vpack.c.b16 %v89, %v85
  %vm98 = vcmask 130048
  %v100 = vsel %vm98, %v74, 0
  %v103 = vsel %vm98, %v75, 0
  %v106 = vsel %vm98, %v76, 0
  %v109 = vsel %vm98, %v77, 0
  %111 = vmatprep.subr.bf16.mxu0 0
  %112 = vmatpush1.bf16.msra.mxu0 0
  %113 = vmatprep.subr.bf16.mxu0 0
  %114 = vmatpush1.bf16.msra.mxu0 0
  %115 = vmatprep.subr.bf16.mxu0 0
  %116 = vmatpush1.bf16.msra.mxu0 0
  %117 = vmatprep.subr.bf16.mxu0 0
  %118 = vmatpush1.bf16.msra.mxu0 0
  %119 = vmatprep.subr.bf16.mxu0 0
  %120 = vmatpush1.bf16.msra.mxu0 0
  %121 = vmatprep.subr.bf16.mxu0 0
  %122 = vmatpush1.bf16.msra.mxu0 0
  %123 = vmatprep.subr.bf16.mxu0 0
  %124 = vmatpush1.bf16.msra.mxu0 0
  %125 = vmatprep.subr.bf16.mxu0 %v91
  %126 = vmatpush1.bf16.msra.mxu0 %v90
  %127 = vmatprep.subr.bf16.mxu0 0
  %128 = vmatpush2.bf16.msra.mxu0 0
  %129 = vmatprep.subr.bf16.mxu0 0
  %130 = vmatpush2.bf16.msra.mxu0 0
  %131 = vmatprep.subr.bf16.mxu0 0
  %132 = vmatpush2.bf16.msra.mxu0 0
  %133 = vmatprep.subr.bf16.mxu0 0
  %134 = vmatpush2.bf16.msra.mxu0 0
  %135 = vmatprep.subr.bf16.mxu0 0
  %136 = vmatpush2.bf16.msra.mxu0 0
  %137 = vmatprep.subr.bf16.mxu0 0
  %138 = vmatpush2.bf16.msra.mxu0 0
  %139 = vmatprep.subr.bf16.mxu0 0
  %140 = vmatpush2.bf16.msra.mxu0 0
  %141 = vmatprep.subr.bf16.mxu0 0
  %142 = vmatpush2.bf16.msra.mxu0 0
  %143 = vmatprep.mubr.bf16.mxu0 0
  %144 = vmatmul.mubr.bf16.gmra.mxu0 %v100
  %v145 = vpop.f32.mrf.mxu0
  %v146 = vadd.f32 %v41, %v145
  %v147 = vpop.f32.mrf.mxu0
  %v148 = vadd.f32 %v45, %v147
  %v149 = vpop.f32.mrf.mxu0
  %v150 = vadd.f32 %v41, %v149
  %v151 = vpop.f32.mrf.mxu0
  %v152 = vadd.f32 %v45, %v151
  %153 = vmatprep.mubr.bf16.mxu0 0
  %154 = vmatmul.mubr.bf16.gmra.mxu0 %v103
  %v155 = vpop.f32.mrf.mxu0
  %v156 = vadd.f32 %v41, %v155
  %v157 = vpop.f32.mrf.mxu0
  %v158 = vadd.f32 %v45, %v157
  %v159 = vpop.f32.mrf.mxu0
  %v160 = vadd.f32 %v41, %v159
  %v161 = vpop.f32.mrf.mxu0
  %v162 = vadd.f32 %v45, %v161
  %163 = vmatprep.mubr.bf16.mxu0 0
  %164 = vmatmul.mubr.bf16.gmra.mxu0 %v106
  %v165 = vpop.f32.mrf.mxu0
  %v166 = vadd.f32 %v41, %v165
  %v167 = vpop.f32.mrf.mxu0
  %v168 = vadd.f32 %v45, %v167
  %v169 = vpop.f32.mrf.mxu0
  %v170 = vadd.f32 %v41, %v169
  %v171 = vpop.f32.mrf.mxu0
  %v172 = vadd.f32 %v45, %v171
  %173 = vmatprep.mubr.bf16.mxu0 0
  %174 = vmatmul.mubr.bf16.gmra.mxu0 %v109
  %v175 = vpop.f32.mrf.mxu0
  %v176 = vadd.f32 %v41, %v175
  %v177 = vpop.f32.mrf.mxu0
  %v178 = vadd.f32 %v45, %v177
  %v179 = vpop.f32.mrf.mxu0
  %v180 = vadd.f32 %v41, %v179
  %v181 = vpop.f32.mrf.mxu0
  %v182 = vadd.f32 %v45, %v181
  %183 = vdwg.mxu0
  %184 = vmatprep.subr.bf16.mxu0 0
  %185 = vmatpush1.bf16.msra.mxu0 0
  %186 = vmatprep.subr.bf16.mxu0 0
  %187 = vmatpush1.bf16.msra.mxu0 0
  %188 = vmatprep.subr.bf16.mxu0 0
  %189 = vmatpush1.bf16.msra.mxu0 0
  %190 = vmatprep.subr.bf16.mxu0 0
  %191 = vmatpush1.bf16.msra.mxu0 0
  %192 = vmatprep.subr.bf16.mxu0 0
  %193 = vmatpush1.bf16.msra.mxu0 0
  %194 = vmatprep.subr.bf16.mxu0 0
  %195 = vmatpush1.bf16.msra.mxu0 0
  %196 = vmatprep.subr.bf16.mxu0 0
  %197 = vmatpush1.bf16.msra.mxu0 0
  %198 = vmatprep.subr.bf16.mxu0 %v93
  %199 = vmatpush1.bf16.msra.mxu0 %v92
  %200 = vmatprep.subr.bf16.mxu0 0
  %201 = vmatpush2.bf16.msra.mxu0 0
  %202 = vmatprep.subr.bf16.mxu0 0
  %203 = vmatpush2.bf16.msra.mxu0 0
  %204 = vmatprep.subr.bf16.mxu0 0
  %205 = vmatpush2.bf16.msra.mxu0 0
  %206 = vmatprep.subr.bf16.mxu0 0
  %207 = vmatpush2.bf16.msra.mxu0 0
  %208 = vmatprep.subr.bf16.mxu0 0
  %209 = vmatpush2.bf16.msra.mxu0 0
  %210 = vmatprep.subr.bf16.mxu0 0
  %211 = vmatpush2.bf16.msra.mxu0 0
  %212 = vmatprep.subr.bf16.mxu0 0
  %213 = vmatpush2.bf16.msra.mxu0 0
  %214 = vmatprep.subr.bf16.mxu0 0
  %215 = vmatpush2.bf16.msra.mxu0 0
  %216 = vmatprep.mubr.bf16.mxu0 0
  %217 = vmatmul.mubr.bf16.gmra.mxu0 %v100
  %v218 = vpop.f32.mrf.mxu0
  %v219 = vadd.f32 %v49, %v218
  %v220 = vpop.f32.mrf.mxu0
  %v221 = vadd.f32 %v53, %v220
  %v222 = vpop.f32.mrf.mxu0
  %v223 = vadd.f32 %v49, %v222
  %v224 = vpop.f32.mrf.mxu0
  %v225 = vadd.f32 %v53, %v224
  %226 = vmatprep.mubr.bf16.mxu0 0
  %227 = vmatmul.mubr.bf16.gmra.mxu0 %v103
  %v228 = vpop.f32.mrf.mxu0
  %v229 = vadd.f32 %v49, %v228
  %v230 = vpop.f32.mrf.mxu0
  %v231 = vadd.f32 %v53, %v230
  %v232 = vpop.f32.mrf.mxu0
  %v233 = vadd.f32 %v49, %v232
  %v234 = vpop.f32.mrf.mxu0
  %v235 = vadd.f32 %v53, %v234
  %236 = vmatprep.mubr.bf16.mxu0 0
  %237 = vmatmul.mubr.bf16.gmra.mxu0 %v106
  %v238 = vpop.f32.mrf.mxu0
  %v239 = vadd.f32 %v49, %v238
  %v240 = vpop.f32.mrf.mxu0
  %v241 = vadd.f32 %v53, %v240
  %v242 = vpop.f32.mrf.mxu0
  %v243 = vadd.f32 %v49, %v242
  %v244 = vpop.f32.mrf.mxu0
  %v245 = vadd.f32 %v53, %v244
  %246 = vmatprep.mubr.bf16.mxu0 0
  %247 = vmatmul.mubr.bf16.gmra.mxu0 %v109
  %v248 = vpop.f32.mrf.mxu0
  %v249 = vadd.f32 %v49, %v248
  %v250 = vpop.f32.mrf.mxu0
  %v251 = vadd.f32 %v53, %v250
  %v252 = vpop.f32.mrf.mxu0
  %v253 = vadd.f32 %v49, %v252
  %v254 = vpop.f32.mrf.mxu0
  %v255 = vadd.f32 %v53, %v254
  %256 = vdwg.mxu0
  %257 = vst [vmem:[#allocation2] sm:$0xff] %v146
  %258 = vst [vmem:[#allocation2 + $0x8] sm:$0xff] %v148
  %259 = vst [vmem:[#allocation2 + $0x10] sm:$0xff] %v219
  %260 = vst [vmem:[#allocation2 + $0x18] sm:$0xff] %v221
  %261 = vst [vmem:[#allocation2 + $0x20] sm:$0xff] %v150
  %262 = vst [vmem:[#allocation2 + $0x28] sm:$0xff] %v152
  %263 = vst [vmem:[#allocation2 + $0x30] sm:$0xff] %v223
  %264 = vst [vmem:[#allocation2 + $0x38] sm:$0xff] %v225
  %265 = vst [vmem:[#allocation2 + $0x40] sm:$0xff] %v156
  %266 = vst [vmem:[#allocation2 + $0x48] sm:$0xff] %v158
  %267 = vst [vmem:[#allocation2 + $0x50] sm:$0xff] %v229
  %268 = vst [vmem:[#allocation2 + $0x58] sm:$0xff] %v231
  %269 = vst [vmem:[#allocation2 + $0x60] sm:$0xff] %v160
  %270 = vst [vmem:[#allocation2 + $0x68] sm:$0xff] %v162
  %271 = vst [vmem:[#allocation2 + $0x70] sm:$0xff] %v233
  %272 = vst [vmem:[#allocation2 + $0x78] sm:$0xff] %v235
  %273 = vst [vmem:[#allocation2 + $0x80] sm:$0xff] %v166
  %274 = vst [vmem:[#allocation2 + $0x88] sm:$0xff] %v168
  %275 = vst [vmem:[#allocation2 + $0x90] sm:$0xff] %v239
  %276 = vst [vmem:[#allocation2 + $0x98] sm:$0xff] %v241
  %277 = vst [vmem:[#allocation2 + $0xa0] sm:$0xff] %v170
  %278 = vst [vmem:[#allocation2 + $0xa8] sm:$0xff] %v172
  %279 = vst [vmem:[#allocation2 + $0xb0] sm:$0xff] %v243
  %280 = vst [vmem:[#allocation2 + $0xb8] sm:$0xff] %v245
  %281 = vst [vmem:[#allocation2 + $0xc0] sm:$0xff] %v176
  %282 = vst [vmem:[#allocation2 + $0xc8] sm:$0xff] %v178
  %283 = vst [vmem:[#allocation2 + $0xd0] sm:$0xff] %v249
  %284 = vst [vmem:[#allocation2 + $0xd8] sm:$0xff] %v251
  %285 = vst [vmem:[#allocation2 + $0xe0] sm:$0xff] %v180
  %286 = vst [vmem:[#allocation2 + $0xe8] sm:$0xff] %v182
  %287 = vst [vmem:[#allocation2 + $0xf0] sm:$0xff] %v253
  %288 = vst [vmem:[#allocation2 + $0xf8] sm:$0xff] %v255
  %v289 = vld [vmem:[%s2] sm:$0xff]
  %v290 = vld [vmem:[%s2 + $0x8] sm:$0xff]
  %v291 = vld [vmem:[%s2 + $0x10] sm:$0xff]
  %v292 = vld [vmem:[%s2 + $0x18] sm:$0xff]
  %v293 = vld [vmem:[%s2 + $0x20] sm:$0xff]
  %v294 = vld [vmem:[%s2 + $0x28] sm:$0xff]
  %v295 = vld [vmem:[%s2 + $0x30] sm:$0xff]
  %v296 = vld [vmem:[%s2 + $0x38] sm:$0xff]
  %v297 = vld [vmem:[%s2 + $0x40] sm:$0xff]
  %v298 = vld [vmem:[%s2 + $0x48] sm:$0xff]
  %v299 = vld [vmem:[%s2 + $0x50] sm:$0xff]
  %v300 = vld [vmem:[%s2 + $0x58] sm:$0xff]
  %v301 = vld [vmem:[%s2 + $0x60] sm:$0xff]
  %v302 = vld [vmem:[%s2 + $0x68] sm:$0xff]
  %v303 = vld [vmem:[%s2 + $0x70] sm:$0xff]
  %v304 = vld [vmem:[%s2 + $0x78] sm:$0xff]
  %v305 = vld [vmem:[%s2 + $0x80] sm:$0xff]
  %v306 = vld [vmem:[%s2 + $0x88] sm:$0xff]
  %v307 = vld [vmem:[%s2 + $0x90] sm:$0xff]
  %v308 = vld [vmem:[%s2 + $0x98] sm:$0xff]
  %v309 = vld [vmem:[%s2 + $0xa0] sm:$0xff]
  %v310 = vld [vmem:[%s2 + $0xa8] sm:$0xff]
  %v311 = vld [vmem:[%s2 + $0xb0] sm:$0xff]
  %v312 = vld [vmem:[%s2 + $0xb8] sm:$0xff]
  %v313 = vld [vmem:[%s2 + $0xc0] sm:$0xff]
  %v314 = vld [vmem:[%s2 + $0xc8] sm:$0xff]
  %v315 = vld [vmem:[%s2 + $0xd0] sm:$0xff]
  %v316 = vld [vmem:[%s2 + $0xd8] sm:$0xff]
  %v317 = vld [vmem:[%s2 + $0xe0] sm:$0xff]
  %v318 = vld [vmem:[%s2 + $0xe8] sm:$0xff]
  %v319 = vld [vmem:[%s2 + $0xf0] sm:$0xff]
  %v320 = vld [vmem:[%s2 + $0xf8] sm:$0xff]
  %v321 = vld [vmem:[#allocation3] sm:$0xff]
  %v322 = vld [vmem:[#allocation4] sm:$0xff]
  %s323 = smul.u32 0, 4
  %s324 = smul.addr %s323, 8
  %s325 = scalar_lea.vmem [#allocation2], %s324
  %v326 = vld [vmem:[%s325] sm:$0xff]
  %v327 = vld [vmem:[%s325 + $0x8] sm:$0xff]
  %v328 = vld [vmem:[%s325 + $0x10] sm:$0xff]
  %v329 = vld [vmem:[%s325 + $0x18] sm:$0xff]
  %v330 = vpack.c.bf16 %v321, %v321
  %v363 = vunpack.c.l.b16 %v289
  %v364 = vunpack.c.h.b16 %v289
  %v365 = vunpack.c.l.b16 %v290
  %v366 = vunpack.c.h.b16 %v290
  %v367 = vunpack.c.l.b16 %v291
  %v368 = vunpack.c.h.b16 %v291
  %v369 = vunpack.c.l.b16 %v292
  %v370 = vunpack.c.h.b16 %v292
  %v371 = vunpack.c.l.b16 %v293
  %v372 = vunpack.c.h.b16 %v293
  %v373 = vunpack.c.l.b16 %v294
  %v374 = vunpack.c.h.b16 %v294
  %v375 = vunpack.c.l.b16 %v295
  %v376 = vunpack.c.h.b16 %v295
  %v377 = vunpack.c.l.b16 %v296
  %v378 = vunpack.c.h.b16 %v296
  %v379 = vunpack.c.l.b16 %v297
  %v380 = vunpack.c.h.b16 %v297
  %v381 = vunpack.c.l.b16 %v298
  %v382 = vunpack.c.h.b16 %v298
  %v383 = vunpack.c.l.b16 %v299
  %v384 = vunpack.c.h.b16 %v299
  %v385 = vunpack.c.l.b16 %v300
  %v386 = vunpack.c.h.b16 %v300
  %v387 = vunpack.c.l.b16 %v301
  %v388 = vunpack.c.h.b16 %v301
  %v389 = vunpack.c.l.b16 %v302
  %v390 = vunpack.c.h.b16 %v302
  %v391 = vunpack.c.l.b16 %v303
  %v392 = vunpack.c.h.b16 %v303
  %v393 = vunpack.c.l.b16 %v304
  %v394 = vunpack.c.h.b16 %v304
  %v395 = vunpack.c.l.b16 %v305
  %v396 = vunpack.c.h.b16 %v305
  %v397 = vunpack.c.l.b16 %v306
  %v398 = vunpack.c.h.b16 %v306
  %v399 = vunpack.c.l.b16 %v307
  %v400 = vunpack.c.h.b16 %v307
  %v401 = vunpack.c.l.b16 %v308
  %v402 = vunpack.c.h.b16 %v308
  %v403 = vunpack.c.l.b16 %v309
  %v404 = vunpack.c.h.b16 %v309
  %v405 = vunpack.c.l.b16 %v310
  %v406 = vunpack.c.h.b16 %v310
  %v407 = vunpack.c.l.b16 %v311
  %v408 = vunpack.c.h.b16 %v311
  %v409 = vunpack.c.l.b16 %v312
  %v410 = vunpack.c.h.b16 %v312
  %v411 = vunpack.c.l.b16 %v313
  %v412 = vunpack.c.h.b16 %v313
  %v413 = vunpack.c.l.b16 %v314
  %v414 = vunpack.c.h.b16 %v314
  %v415 = vunpack.c.l.b16 %v315
  %v416 = vunpack.c.h.b16 %v315
  %v417 = vunpack.c.l.b16 %v316
  %v418 = vunpack.c.h.b16 %v316
  %v419 = vunpack.c.l.b16 %v317
  %v420 = vunpack.c.h.b16 %v317
  %v421 = vunpack.c.l.b16 %v318
  %v422 = vunpack.c.h.b16 %v318
  %v423 = vunpack.c.l.b16 %v319
  %v424 = vunpack.c.h.b16 %v319
  %v425 = vunpack.c.l.b16 %v320
  %v426 = vunpack.c.h.b16 %v320
  %v427 = vpack.c.b16 %v367, %v363
  %v428 = vpack.c.b16 %v368, %v364
  %v429 = vpack.c.b16 %v369, %v365
  %v430 = vpack.c.b16 %v370, %v366
  %v431 = vpack.c.b16 %v375, %v371
  %v432 = vpack.c.b16 %v376, %v372
  %v433 = vpack.c.b16 %v377, %v373
  %v434 = vpack.c.b16 %v378, %v374
  %v435 = vpack.c.b16 %v383, %v379
  %v436 = vpack.c.b16 %v384, %v380
  %v437 = vpack.c.b16 %v385, %v381
  %v438 = vpack.c.b16 %v386, %v382
  %v439 = vpack.c.b16 %v391, %v387
  %v440 = vpack.c.b16 %v392, %v388
  %v441 = vpack.c.b16 %v393, %v389
  %v442 = vpack.c.b16 %v394, %v390
  %v443 = vpack.c.b16 %v399, %v395
  %v444 = vpack.c.b16 %v400, %v396
  %v445 = vpack.c.b16 %v401, %v397
  %v446 = vpack.c.b16 %v402, %v398
  %v447 = vpack.c.b16 %v407, %v403
  %v448 = vpack.c.b16 %v408, %v404
  %v449 = vpack.c.b16 %v409, %v405
  %v450 = vpack.c.b16 %v410, %v406
  %v451 = vpack.c.b16 %v415, %v411
  %v452 = vpack.c.b16 %v416, %v412
  %v453 = vpack.c.b16 %v417, %v413
  %v454 = vpack.c.b16 %v418, %v414
  %v455 = vpack.c.b16 %v423, %v419
  %v456 = vpack.c.b16 %v424, %v420
  %v457 = vpack.c.b16 %v425, %v421
  %v458 = vpack.c.b16 %v426, %v422
  %491 = vmatprep.subr.bf16.mxu0 %v456
  %492 = vmatpush1.bf16.msra.mxu0 %v455
  %493 = vmatprep.subr.bf16.mxu0 %v452
  %494 = vmatpush1.bf16.msra.mxu0 %v451
  %495 = vmatprep.subr.bf16.mxu0 %v448
  %496 = vmatpush1.bf16.msra.mxu0 %v447
  %497 = vmatprep.subr.bf16.mxu0 %v444
  %498 = vmatpush1.bf16.msra.mxu0 %v443
  %499 = vmatprep.subr.bf16.mxu0 %v440
  %500 = vmatpush1.bf16.msra.mxu0 %v439
  %501 = vmatprep.subr.bf16.mxu0 %v436
  %502 = vmatpush1.bf16.msra.mxu0 %v435
  %503 = vmatprep.subr.bf16.mxu0 %v432
  %504 = vmatpush1.bf16.msra.mxu0 %v431
  %505 = vmatprep.subr.bf16.mxu0 %v428
  %506 = vmatpush1.bf16.msra.mxu0 %v427
  %507 = vmatprep.subr.bf16.mxu0 0
  %508 = vmatpush2.bf16.msra.mxu0 0
  %509 = vmatprep.subr.bf16.mxu0 0
  %510 = vmatpush2.bf16.msra.mxu0 0
  %511 = vmatprep.subr.bf16.mxu0 0
  %512 = vmatpush2.bf16.msra.mxu0 0
  %513 = vmatprep.subr.bf16.mxu0 0
  %514 = vmatpush2.bf16.msra.mxu0 0
  %515 = vmatprep.subr.bf16.mxu0 0
  %516 = vmatpush2.bf16.msra.mxu0 0
  %517 = vmatprep.subr.bf16.mxu0 0
  %518 = vmatpush2.bf16.msra.mxu0 0
  %519 = vmatprep.subr.bf16.mxu0 0
  %520 = vmatpush2.bf16.msra.mxu0 0
  %521 = vmatprep.subr.bf16.mxu0 0
  %522 = vmatpush2.bf16.msra.mxu0 0
  %523 = vmatprep.mubr.bf16.mxu0 0
  %524 = vmatmul.mubr.bf16.gmra.mxu0 %v330
  %v525 = vpop.f32.mrf.mxu0
  %v526 = vadd.f32 0.0, %v525
  %v527 = vpop.f32.mrf.mxu0
  %v528 = vadd.f32 0.0, %v527
  %v529 = vpop.f32.mrf.mxu0
  %v530 = vpop.f32.mrf.mxu0
  %531 = vdwg.mxu0
  %532 = vmatprep.subr.bf16.mxu0 %v458
  %533 = vmatpush1.bf16.msra.mxu0 %v457
  %534 = vmatprep.subr.bf16.mxu0 %v454
  %535 = vmatpush1.bf16.msra.mxu0 %v453
  %536 = vmatprep.subr.bf16.mxu0 %v450
  %537 = vmatpush1.bf16.msra.mxu0 %v449
  %538 = vmatprep.subr.bf16.mxu0 %v446
  %539 = vmatpush1.bf16.msra.mxu0 %v445
  %540 = vmatprep.subr.bf16.mxu0 %v442
  %541 = vmatpush1.bf16.msra.mxu0 %v441
  %542 = vmatprep.subr.bf16.mxu0 %v438
  %543 = vmatpush1.bf16.msra.mxu0 %v437
  %544 = vmatprep.subr.bf16.mxu0 %v434
  %545 = vmatpush1.bf16.msra.mxu0 %v433
  %546 = vmatprep.subr.bf16.mxu0 %v430
  %547 = vmatpush1.bf16.msra.mxu0 %v429
  %548 = vmatprep.subr.bf16.mxu0 0
  %549 = vmatpush2.bf16.msra.mxu0 0
  %550 = vmatprep.subr.bf16.mxu0 0
  %551 = vmatpush2.bf16.msra.mxu0 0
  %552 = vmatprep.subr.bf16.mxu0 0
  %553 = vmatpush2.bf16.msra.mxu0 0
  %554 = vmatprep.subr.bf16.mxu0 0
  %555 = vmatpush2.bf16.msra.mxu0 0
  %556 = vmatprep.subr.bf16.mxu0 0
  %557 = vmatpush2.bf16.msra.mxu0 0
  %558 = vmatprep.subr.bf16.mxu0 0
  %559 = vmatpush2.bf16.msra.mxu0 0
  %560 = vmatprep.subr.bf16.mxu0 0
  %561 = vmatpush2.bf16.msra.mxu0 0
  %562 = vmatprep.subr.bf16.mxu0 0
  %563 = vmatpush2.bf16.msra.mxu0 0
  %564 = vmatprep.mubr.bf16.mxu0 0
  %565 = vmatmul.mubr.bf16.gmra.mxu0 %v330
  %v566 = vpop.f32.mrf.mxu0
  %v567 = vadd.f32 0.0, %v566
  %v568 = vpop.f32.mrf.mxu0
  %v569 = vadd.f32 0.0, %v568
  %v570 = vpop.f32.mrf.mxu0
  %v571 = vpop.f32.mrf.mxu0
  %572 = vdwg.mxu0
  %v573 = vadd.f32 %v326, %v526
  %v574 = vadd.f32 %v327, %v528
  %v575 = vadd.f32 %v328, %v567
  %v576 = vadd.f32 %v329, %v569
  %v577 = vmul.f32 %v573, 0.5
  %v578 = vtanh.pop %v577
  %v579 = vmul.f32 %v578, 0.5
  %v580 = vadd.f32 %v579, 0.5
  %v581 = vmul.f32 %v574, 0.5
  %v582 = vtanh.pop %v581
  %v583 = vmul.f32 %v582, 0.5
  %v584 = vadd.f32 %v583, 0.5
  %v585 = vtanh.pop %v575
  %v586 = vmul.f32 %v576, 0.5
  %v587 = vtanh.pop %v586
  %v588 = vmul.f32 %v587, 0.5
  %v589 = vadd.f32 %v588, 0.5
  %v590 = vmul.f32 %v584, %v322
  %v591 = vmul.f32 %v580, %v585
  %v592 = vadd.f32 %v590, %v591
  %v593 = vtanh.pop %v592
  %v594 = vmul.f32 %v589, %v593
  %s595 = smul.u32 1, 4
  %s596 = smul.addr %s595, 8
  %s597 = scalar_lea.vmem [#allocation2], %s596
  %v598 = vld [vmem:[%s597] sm:$0xff]
  %v599 = vld [vmem:[%s597 + $0x8] sm:$0xff]
  %v600 = vld [vmem:[%s597 + $0x10] sm:$0xff]
  %v601 = vld [vmem:[%s597 + $0x18] sm:$0xff]
  %v602 = vpack.c.bf16 %v594, %v594
  %603 = vmatprep.subr.bf16.mxu0 %v456
  %604 = vmatpush1.bf16.msra.mxu0 %v455
  %605 = vmatprep.subr.bf16.mxu0 %v452
  %606 = vmatpush1.bf16.msra.mxu0 %v451
  %607 = vmatprep.subr.bf16.mxu0 %v448
  %608 = vmatpush1.bf16.msra.mxu0 %v447
  %609 = vmatprep.subr.bf16.mxu0 %v444
  %610 = vmatpush1.bf16.msra.mxu0 %v443
  %611 = vmatprep.subr.bf16.mxu0 %v440
  %612 = vmatpush1.bf16.msra.mxu0 %v439
  %613 = vmatprep.subr.bf16.mxu0 %v436
  %614 = vmatpush1.bf16.msra.mxu0 %v435
  %615 = vmatprep.subr.bf16.mxu0 %v432
  %616 = vmatpush1.bf16.msra.mxu0 %v431
  %617 = vmatprep.subr.bf16.mxu0 %v428
  %618 = vmatpush1.bf16.msra.mxu0 %v427
  %619 = vmatprep.subr.bf16.mxu0 0
  %620 = vmatpush2.bf16.msra.mxu0 0
  %621 = vmatprep.subr.bf16.mxu0 0
  %622 = vmatpush2.bf16.msra.mxu0 0
  %623 = vmatprep.subr.bf16.mxu0 0
  %624 = vmatpush2.bf16.msra.mxu0 0
  %625 = vmatprep.subr.bf16.mxu0 0
  %626 = vmatpush2.bf16.msra.mxu0 0
  %627 = vmatprep.subr.bf16.mxu0 0
  %628 = vmatpush2.bf16.msra.mxu0 0
  %629 = vmatprep.subr.bf16.mxu0 0
  %630 = vmatpush2.bf16.msra.mxu0 0
  %631 = vmatprep.subr.bf16.mxu0 0
  %632 = vmatpush2.bf16.msra.mxu0 0
  %633 = vmatprep.subr.bf16.mxu0 0
  %634 = vmatpush2.bf16.msra.mxu0 0
  %635 = vmatprep.mubr.bf16.mxu0 0
  %636 = vmatmul.mubr.bf16.gmra.mxu0 %v602
  %v637 = vpop.f32.mrf.mxu0
  %v638 = vadd.f32 0.0, %v637
  %v639 = vpop.f32.mrf.mxu0
  %v640 = vadd.f32 0.0, %v639
  %v641 = vpop.f32.mrf.mxu0
  %v642 = vpop.f32.mrf.mxu0
  %643 = vdwg.mxu0
  %644 = vmatprep.subr.bf16.mxu0 %v458
  %645 = vmatpush1.bf16.msra.mxu0 %v457
  %646 = vmatprep.subr.bf16.mxu0 %v454
  %647 = vmatpush1.bf16.msra.mxu0 %v453
  %648 = vmatprep.subr.bf16.mxu0 %v450
  %649 = vmatpush1.bf16.msra.mxu0 %v449
  %650 = vmatprep.subr.bf16.mxu0 %v446
  %651 = vmatpush1.bf16.msra.mxu0 %v445
  %652 = vmatprep.subr.bf16.mxu0 %v442
  %653 = vmatpush1.bf16.msra.mxu0 %v441
  %654 = vmatprep.subr.bf16.mxu0 %v438
  %655 = vmatpush1.bf16.msra.mxu0 %v437
  %656 = vmatprep.subr.bf16.mxu0 %v434
  %657 = vmatpush1.bf16.msra.mxu0 %v433
  %658 = vmatprep.subr.bf16.mxu0 %v430
  %659 = vmatpush1.bf16.msra.mxu0 %v429
  %660 = vmatprep.subr.bf16.mxu0 0
  %661 = vmatpush2.bf16.msra.mxu0 0
  %662 = vmatprep.subr.bf16.mxu0 0
  %663 = vmatpush2.bf16.msra.mxu0 0
  %664 = vmatprep.subr.bf16.mxu0 0
  %665 = vmatpush2.bf16.msra.mxu0 0
  %666 = vmatprep.subr.bf16.mxu0 0
  %667 = vmatpush2.bf16.msra.mxu0 0
  %668 = vmatprep.subr.bf16.mxu0 0
  %669 = vmatpush2.bf16.msra.mxu0 0
  %670 = vmatprep.subr.bf16.mxu0 0
  %671 = vmatpush2.bf16.msra.mxu0 0
  %672 = vmatprep.subr.bf16.mxu0 0
  %673 = vmatpush2.bf16.msra.mxu0 0
  %674 = vmatprep.subr.bf16.mxu0 0
  %675 = vmatpush2.bf16.msra.mxu0 0
  %676 = vmatprep.mubr.bf16.mxu0 0
  %677 = vmatmul.mubr.bf16.gmra.mxu0 %v602
  %v678 = vpop.f32.mrf.mxu0
  %v679 = vadd.f32 0.0, %v678
  %v680 = vpop.f32.mrf.mxu0
  %v681 = vadd.f32 0.0, %v680
  %v682 = vpop.f32.mrf.mxu0
  %v683 = vpop.f32.mrf.mxu0
  %684 = vdwg.mxu0
  %v685 = vadd.f32 %v598, %v638
  %v686 = vadd.f32 %v599, %v640
  %v687 = vadd.f32 %v600, %v679
  %v688 = vadd.f32 %v601, %v681
  %v689 = vmul.f32 %v685, 0.5
  %v690 = vtanh.pop %v689
  %v691 = vmul.f32 %v690, 0.5
  %v692 = vadd.f32 %v691, 0.5
  %v693 = vmul.f32 %v686, 0.5
  %v694 = vtanh.pop %v693
  %v695 = vmul.f32 %v694, 0.5
  %v696 = vadd.f32 %v695, 0.5
  %v697 = vtanh.pop %v687
  %v698 = vmul.f32 %v688, 0.5
  %v699 = vtanh.pop %v698
  %v700 = vmul.f32 %v699, 0.5
  %v701 = vadd.f32 %v700, 0.5
  %v702 = vmul.f32 %v696, %v592
  %v703 = vmul.f32 %v692, %v697
  %v704 = vadd.f32 %v702, %v703
  %v705 = vtanh.pop %v704
  %v706 = vmul.f32 %v701, %v705
  %s707 = smul.u32 2, 4
  %s708 = smul.addr %s707, 8
  %s709 = scalar_lea.vmem [#allocation2], %s708
  %v710 = vld [vmem:[%s709] sm:$0xff]
  %v711 = vld [vmem:[%s709 + $0x8] sm:$0xff]
  %v712 = vld [vmem:[%s709 + $0x10] sm:$0xff]
  %v713 = vld [vmem:[%s709 + $0x18] sm:$0xff]
  %v714 = vpack.c.bf16 %v706, %v706
  %715 = vmatprep.subr.bf16.mxu0 %v456
  %716 = vmatpush1.bf16.msra.mxu0 %v455
  %717 = vmatprep.subr.bf16.mxu0 %v452
  %718 = vmatpush1.bf16.msra.mxu0 %v451
  %719 = vmatprep.subr.bf16.mxu0 %v448
  %720 = vmatpush1.bf16.msra.mxu0 %v447
  %721 = vmatprep.subr.bf16.mxu0 %v444
  %722 = vmatpush1.bf16.msra.mxu0 %v443
  %723 = vmatprep.subr.bf16.mxu0 %v440
  %724 = vmatpush1.bf16.msra.mxu0 %v439
  %725 = vmatprep.subr.bf16.mxu0 %v436
  %726 = vmatpush1.bf16.msra.mxu0 %v435
  %727 = vmatprep.subr.bf16.mxu0 %v432
  %728 = vmatpush1.bf16.msra.mxu0 %v431
  %729 = vmatprep.subr.bf16.mxu0 %v428
  %730 = vmatpush1.bf16.msra.mxu0 %v427
  %731 = vmatprep.subr.bf16.mxu0 0
  %732 = vmatpush2.bf16.msra.mxu0 0
  %733 = vmatprep.subr.bf16.mxu0 0
  %734 = vmatpush2.bf16.msra.mxu0 0
  %735 = vmatprep.subr.bf16.mxu0 0
  %736 = vmatpush2.bf16.msra.mxu0 0
  %737 = vmatprep.subr.bf16.mxu0 0
  %738 = vmatpush2.bf16.msra.mxu0 0
  %739 = vmatprep.subr.bf16.mxu0 0
  %740 = vmatpush2.bf16.msra.mxu0 0
  %741 = vmatprep.subr.bf16.mxu0 0
  %742 = vmatpush2.bf16.msra.mxu0 0
  %743 = vmatprep.subr.bf16.mxu0 0
  %744 = vmatpush2.bf16.msra.mxu0 0
  %745 = vmatprep.subr.bf16.mxu0 0
  %746 = vmatpush2.bf16.msra.mxu0 0
  %747 = vmatprep.mubr.bf16.mxu0 0
  %748 = vmatmul.mubr.bf16.gmra.mxu0 %v714
  %v749 = vpop.f32.mrf.mxu0
  %v750 = vadd.f32 0.0, %v749
  %v751 = vpop.f32.mrf.mxu0
  %v752 = vadd.f32 0.0, %v751
  %v753 = vpop.f32.mrf.mxu0
  %v754 = vpop.f32.mrf.mxu0
  %755 = vdwg.mxu0
  %756 = vmatprep.subr.bf16.mxu0 %v458
  %757 = vmatpush1.bf16.msra.mxu0 %v457
  %758 = vmatprep.subr.bf16.mxu0 %v454
  %759 = vmatpush1.bf16.msra.mxu0 %v453
  %760 = vmatprep.subr.bf16.mxu0 %v450
  %761 = vmatpush1.bf16.msra.mxu0 %v449
  %762 = vmatprep.subr.bf16.mxu0 %v446
  %763 = vmatpush1.bf16.msra.mxu0 %v445
  %764 = vmatprep.subr.bf16.mxu0 %v442
  %765 = vmatpush1.bf16.msra.mxu0 %v441
  %766 = vmatprep.subr.bf16.mxu0 %v438
  %767 = vmatpush1.bf16.msra.mxu0 %v437
  %768 = vmatprep.subr.bf16.mxu0 %v434
  %769 = vmatpush1.bf16.msra.mxu0 %v433
  %770 = vmatprep.subr.bf16.mxu0 %v430
  %771 = vmatpush1.bf16.msra.mxu0 %v429
  %772 = vmatprep.subr.bf16.mxu0 0
  %773 = vmatpush2.bf16.msra.mxu0 0
  %774 = vmatprep.subr.bf16.mxu0 0
  %775 = vmatpush2.bf16.msra.mxu0 0
  %776 = vmatprep.subr.bf16.mxu0 0
  %777 = vmatpush2.bf16.msra.mxu0 0
  %778 = vmatprep.subr.bf16.mxu0 0
  %779 = vmatpush2.bf16.msra.mxu0 0
  %780 = vmatprep.subr.bf16.mxu0 0
  %781 = vmatpush2.bf16.msra.mxu0 0
  %782 = vmatprep.subr.bf16.mxu0 0
  %783 = vmatpush2.bf16.msra.mxu0 0
  %784 = vmatprep.subr.bf16.mxu0 0
  %785 = vmatpush2.bf16.msra.mxu0 0
  %786 = vmatprep.subr.bf16.mxu0 0
  %787 = vmatpush2.bf16.msra.mxu0 0
  %788 = vmatprep.mubr.bf16.mxu0 0
  %789 = vmatmul.mubr.bf16.gmra.mxu0 %v714
  %v790 = vpop.f32.mrf.mxu0
  %v791 = vadd.f32 0.0, %v790
  %v792 = vpop.f32.mrf.mxu0
  %v793 = vadd.f32 0.0, %v792
  %v794 = vpop.f32.mrf.mxu0
  %v795 = vpop.f32.mrf.mxu0
  %796 = vdwg.mxu0
  %v797 = vadd.f32 %v710, %v750
  %v798 = vadd.f32 %v711, %v752
  %v799 = vadd.f32 %v712, %v791
  %v800 = vadd.f32 %v713, %v793
  %v801 = vmul.f32 %v797, 0.5
  %v802 = vtanh.pop %v801
  %v803 = vmul.f32 %v802, 0.5
  %v804 = vadd.f32 %v803, 0.5
  %v805 = vmul.f32 %v798, 0.5
  %v806 = vtanh.pop %v805
  %v807 = vmul.f32 %v806, 0.5
  %v808 = vadd.f32 %v807, 0.5
  %v809 = vtanh.pop %v799
  %v810 = vmul.f32 %v800, 0.5
  %v811 = vtanh.pop %v810
  %v812 = vmul.f32 %v811, 0.5
  %v813 = vadd.f32 %v812, 0.5
  %v814 = vmul.f32 %v808, %v704
  %v815 = vmul.f32 %v804, %v809
  %v816 = vadd.f32 %v814, %v815
  %v817 = vtanh.pop %v816
  %v818 = vmul.f32 %v813, %v817
  %s819 = smul.u32 3, 4
  %s820 = smul.addr %s819, 8
  %s821 = scalar_lea.vmem [#allocation2], %s820
  %v822 = vld [vmem:[%s821] sm:$0xff]
  %v823 = vld [vmem:[%s821 + $0x8] sm:$0xff]
  %v824 = vld [vmem:[%s821 + $0x10] sm:$0xff]
  %v825 = vld [vmem:[%s821 + $0x18] sm:$0xff]
  %v826 = vpack.c.bf16 %v818, %v818
  %827 = vmatprep.subr.bf16.mxu0 %v456
  %828 = vmatpush1.bf16.msra.mxu0 %v455
  %829 = vmatprep.subr.bf16.mxu0 %v452
  %830 = vmatpush1.bf16.msra.mxu0 %v451
  %831 = vmatprep.subr.bf16.mxu0 %v448
  %832 = vmatpush1.bf16.msra.mxu0 %v447
  %833 = vmatprep.subr.bf16.mxu0 %v444
  %834 = vmatpush1.bf16.msra.mxu0 %v443
  %835 = vmatprep.subr.bf16.mxu0 %v440
  %836 = vmatpush1.bf16.msra.mxu0 %v439
  %837 = vmatprep.subr.bf16.mxu0 %v436
  %838 = vmatpush1.bf16.msra.mxu0 %v435
  %839 = vmatprep.subr.bf16.mxu0 %v432
  %840 = vmatpush1.bf16.msra.mxu0 %v431
  %841 = vmatprep.subr.bf16.mxu0 %v428
  %842 = vmatpush1.bf16.msra.mxu0 %v427
  %843 = vmatprep.subr.bf16.mxu0 0
  %844 = vmatpush2.bf16.msra.mxu0 0
  %845 = vmatprep.subr.bf16.mxu0 0
  %846 = vmatpush2.bf16.msra.mxu0 0
  %847 = vmatprep.subr.bf16.mxu0 0
  %848 = vmatpush2.bf16.msra.mxu0 0
  %849 = vmatprep.subr.bf16.mxu0 0
  %850 = vmatpush2.bf16.msra.mxu0 0
  %851 = vmatprep.subr.bf16.mxu0 0
  %852 = vmatpush2.bf16.msra.mxu0 0
  %853 = vmatprep.subr.bf16.mxu0 0
  %854 = vmatpush2.bf16.msra.mxu0 0
  %855 = vmatprep.subr.bf16.mxu0 0
  %856 = vmatpush2.bf16.msra.mxu0 0
  %857 = vmatprep.subr.bf16.mxu0 0
  %858 = vmatpush2.bf16.msra.mxu0 0
  %859 = vmatprep.mubr.bf16.mxu0 0
  %860 = vmatmul.mubr.bf16.gmra.mxu0 %v826
  %v861 = vpop.f32.mrf.mxu0
  %v862 = vadd.f32 0.0, %v861
  %v863 = vpop.f32.mrf.mxu0
  %v864 = vadd.f32 0.0, %v863
  %v865 = vpop.f32.mrf.mxu0
  %v866 = vpop.f32.mrf.mxu0
  %867 = vdwg.mxu0
  %868 = vmatprep.subr.bf16.mxu0 %v458
  %869 = vmatpush1.bf16.msra.mxu0 %v457
  %870 = vmatprep.subr.bf16.mxu0 %v454
  %871 = vmatpush1.bf16.msra.mxu0 %v453
  %872 = vmatprep.subr.bf16.mxu0 %v450
  %873 = vmatpush1.bf16.msra.mxu0 %v449
  %874 = vmatprep.subr.bf16.mxu0 %v446
  %875 = vmatpush1.bf16.msra.mxu0 %v445
  %876 = vmatprep.subr.bf16.mxu0 %v442
  %877 = vmatpush1.bf16.msra.mxu0 %v441
  %878 = vmatprep.subr.bf16.mxu0 %v438
  %879 = vmatpush1.bf16.msra.mxu0 %v437
  %880 = vmatprep.subr.bf16.mxu0 %v434
  %881 = vmatpush1.bf16.msra.mxu0 %v433
  %882 = vmatprep.subr.bf16.mxu0 %v430
  %883 = vmatpush1.bf16.msra.mxu0 %v429
  %884 = vmatprep.subr.bf16.mxu0 0
  %885 = vmatpush2.bf16.msra.mxu0 0
  %886 = vmatprep.subr.bf16.mxu0 0
  %887 = vmatpush2.bf16.msra.mxu0 0
  %888 = vmatprep.subr.bf16.mxu0 0
  %889 = vmatpush2.bf16.msra.mxu0 0
  %890 = vmatprep.subr.bf16.mxu0 0
  %891 = vmatpush2.bf16.msra.mxu0 0
  %892 = vmatprep.subr.bf16.mxu0 0
  %893 = vmatpush2.bf16.msra.mxu0 0
  %894 = vmatprep.subr.bf16.mxu0 0
  %895 = vmatpush2.bf16.msra.mxu0 0
  %896 = vmatprep.subr.bf16.mxu0 0
  %897 = vmatpush2.bf16.msra.mxu0 0
  %898 = vmatprep.subr.bf16.mxu0 0
  %899 = vmatpush2.bf16.msra.mxu0 0
  %900 = vmatprep.mubr.bf16.mxu0 0
  %901 = vmatmul.mubr.bf16.gmra.mxu0 %v826
  %v902 = vpop.f32.mrf.mxu0
  %v903 = vadd.f32 0.0, %v902
  %v904 = vpop.f32.mrf.mxu0
  %v905 = vadd.f32 0.0, %v904
  %v906 = vpop.f32.mrf.mxu0
  %v907 = vpop.f32.mrf.mxu0
  %908 = vdwg.mxu0
  %v909 = vadd.f32 %v822, %v862
  %v910 = vadd.f32 %v823, %v864
  %v911 = vadd.f32 %v824, %v903
  %v912 = vadd.f32 %v825, %v905
  %v913 = vmul.f32 %v909, 0.5
  %v914 = vtanh.pop %v913
  %v915 = vmul.f32 %v914, 0.5
  %v916 = vadd.f32 %v915, 0.5
  %v917 = vmul.f32 %v910, 0.5
  %v918 = vtanh.pop %v917
  %v919 = vmul.f32 %v918, 0.5
  %v920 = vadd.f32 %v919, 0.5
  %v921 = vtanh.pop %v911
  %v922 = vmul.f32 %v912, 0.5
  %v923 = vtanh.pop %v922
  %v924 = vmul.f32 %v923, 0.5
  %v925 = vadd.f32 %v924, 0.5
  %v926 = vmul.f32 %v920, %v816
  %v927 = vmul.f32 %v916, %v921
  %v928 = vadd.f32 %v926, %v927
  %v929 = vtanh.pop %v928
  %v930 = vmul.f32 %v925, %v929
  %s931 = smul.u32 4, 4
  %s932 = smul.addr %s931, 8
  %s933 = scalar_lea.vmem [#allocation2], %s932
  %v934 = vld [vmem:[%s933] sm:$0xff]
  %v935 = vld [vmem:[%s933 + $0x8] sm:$0xff]
  %v936 = vld [vmem:[%s933 + $0x10] sm:$0xff]
  %v937 = vld [vmem:[%s933 + $0x18] sm:$0xff]
  %v938 = vpack.c.bf16 %v930, %v930
  %939 = vmatprep.subr.bf16.mxu0 %v456
  %940 = vmatpush1.bf16.msra.mxu0 %v455
  %941 = vmatprep.subr.bf16.mxu0 %v452
  %942 = vmatpush1.bf16.msra.mxu0 %v451
  %943 = vmatprep.subr.bf16.mxu0 %v448
  %944 = vmatpush1.bf16.msra.mxu0 %v447
  %945 = vmatprep.subr.bf16.mxu0 %v444
  %946 = vmatpush1.bf16.msra.mxu0 %v443
  %947 = vmatprep.subr.bf16.mxu0 %v440
  %948 = vmatpush1.bf16.msra.mxu0 %v439
  %949 = vmatprep.subr.bf16.mxu0 %v436
  %950 = vmatpush1.bf16.msra.mxu0 %v435
  %951 = vmatprep.subr.bf16.mxu0 %v432
  %952 = vmatpush1.bf16.msra.mxu0 %v431
  %953 = vmatprep.subr.bf16.mxu0 %v428
  %954 = vmatpush1.bf16.msra.mxu0 %v427
  %955 = vmatprep.subr.bf16.mxu0 0
  %956 = vmatpush2.bf16.msra.mxu0 0
  %957 = vmatprep.subr.bf16.mxu0 0
  %958 = vmatpush2.bf16.msra.mxu0 0
  %959 = vmatprep.subr.bf16.mxu0 0
  %960 = vmatpush2.bf16.msra.mxu0 0
  %961 = vmatprep.subr.bf16.mxu0 0
  %962 = vmatpush2.bf16.msra.mxu0 0
  %963 = vmatprep.subr.bf16.mxu0 0
  %964 = vmatpush2.bf16.msra.mxu0 0
  %965 = vmatprep.subr.bf16.mxu0 0
  %966 = vmatpush2.bf16.msra.mxu0 0
  %967 = vmatprep.subr.bf16.mxu0 0
  %968 = vmatpush2.bf16.msra.mxu0 0
  %969 = vmatprep.subr.bf16.mxu0 0
  %970 = vmatpush2.bf16.msra.mxu0 0
  %971 = vmatprep.mubr.bf16.mxu0 0
  %972 = vmatmul.mubr.bf16.gmra.mxu0 %v938
  %v973 = vpop.f32.mrf.mxu0
  %v974 = vadd.f32 0.0, %v973
  %v975 = vpop.f32.mrf.mxu0
  %v976 = vadd.f32 0.0, %v975
  %v977 = vpop.f32.mrf.mxu0
  %v978 = vpop.f32.mrf.mxu0
  %979 = vdwg.mxu0
  %980 = vmatprep.subr.bf16.mxu0 %v458
  %981 = vmatpush1.bf16.msra.mxu0 %v457
  %982 = vmatprep.subr.bf16.mxu0 %v454
  %983 = vmatpush1.bf16.msra.mxu0 %v453
  %984 = vmatprep.subr.bf16.mxu0 %v450
  %985 = vmatpush1.bf16.msra.mxu0 %v449
  %986 = vmatprep.subr.bf16.mxu0 %v446
  %987 = vmatpush1.bf16.msra.mxu0 %v445
  %988 = vmatprep.subr.bf16.mxu0 %v442
  %989 = vmatpush1.bf16.msra.mxu0 %v441
  %990 = vmatprep.subr.bf16.mxu0 %v438
  %991 = vmatpush1.bf16.msra.mxu0 %v437
  %992 = vmatprep.subr.bf16.mxu0 %v434
  %993 = vmatpush1.bf16.msra.mxu0 %v433
  %994 = vmatprep.subr.bf16.mxu0 %v430
  %995 = vmatpush1.bf16.msra.mxu0 %v429
  %996 = vmatprep.subr.bf16.mxu0 0
  %997 = vmatpush2.bf16.msra.mxu0 0
  %998 = vmatprep.subr.bf16.mxu0 0
  %999 = vmatpush2.bf16.msra.mxu0 0
  %1000 = vmatprep.subr.bf16.mxu0 0
  %1001 = vmatpush2.bf16.msra.mxu0 0
  %1002 = vmatprep.subr.bf16.mxu0 0
  %1003 = vmatpush2.bf16.msra.mxu0 0
  %1004 = vmatprep.subr.bf16.mxu0 0
  %1005 = vmatpush2.bf16.msra.mxu0 0
  %1006 = vmatprep.subr.bf16.mxu0 0
  %1007 = vmatpush2.bf16.msra.mxu0 0
  %1008 = vmatprep.subr.bf16.mxu0 0
  %1009 = vmatpush2.bf16.msra.mxu0 0
  %1010 = vmatprep.subr.bf16.mxu0 0
  %1011 = vmatpush2.bf16.msra.mxu0 0
  %1012 = vmatprep.mubr.bf16.mxu0 0
  %1013 = vmatmul.mubr.bf16.gmra.mxu0 %v938
  %v1014 = vpop.f32.mrf.mxu0
  %v1015 = vadd.f32 0.0, %v1014
  %v1016 = vpop.f32.mrf.mxu0
  %v1017 = vadd.f32 0.0, %v1016
  %v1018 = vpop.f32.mrf.mxu0
  %v1019 = vpop.f32.mrf.mxu0
  %1020 = vdwg.mxu0
  %v1021 = vadd.f32 %v934, %v974
  %v1022 = vadd.f32 %v935, %v976
  %v1023 = vadd.f32 %v936, %v1015
  %v1024 = vadd.f32 %v937, %v1017
  %v1025 = vmul.f32 %v1021, 0.5
  %v1026 = vtanh.pop %v1025
  %v1027 = vmul.f32 %v1026, 0.5
  %v1028 = vadd.f32 %v1027, 0.5
  %v1029 = vmul.f32 %v1022, 0.5
  %v1030 = vtanh.pop %v1029
  %v1031 = vmul.f32 %v1030, 0.5
  %v1032 = vadd.f32 %v1031, 0.5
  %v1033 = vtanh.pop %v1023
  %v1034 = vmul.f32 %v1024, 0.5
  %v1035 = vtanh.pop %v1034
  %v1036 = vmul.f32 %v1035, 0.5
  %v1037 = vadd.f32 %v1036, 0.5
  %v1038 = vmul.f32 %v1032, %v928
  %v1039 = vmul.f32 %v1028, %v1033
  %v1040 = vadd.f32 %v1038, %v1039
  %v1041 = vtanh.pop %v1040
  %v1042 = vmul.f32 %v1037, %v1041
  %s1043 = smul.u32 5, 4
  %s1044 = smul.addr %s1043, 8
  %s1045 = scalar_lea.vmem [#allocation2], %s1044
  %v1046 = vld [vmem:[%s1045] sm:$0xff]
  %v1047 = vld [vmem:[%s1045 + $0x8] sm:$0xff]
  %v1048 = vld [vmem:[%s1045 + $0x10] sm:$0xff]
  %v1049 = vld [vmem:[%s1045 + $0x18] sm:$0xff]
  %v1050 = vpack.c.bf16 %v1042, %v1042
  %1051 = vmatprep.subr.bf16.mxu0 %v456
  %1052 = vmatpush1.bf16.msra.mxu0 %v455
  %1053 = vmatprep.subr.bf16.mxu0 %v452
  %1054 = vmatpush1.bf16.msra.mxu0 %v451
  %1055 = vmatprep.subr.bf16.mxu0 %v448
  %1056 = vmatpush1.bf16.msra.mxu0 %v447
  %1057 = vmatprep.subr.bf16.mxu0 %v444
  %1058 = vmatpush1.bf16.msra.mxu0 %v443
  %1059 = vmatprep.subr.bf16.mxu0 %v440
  %1060 = vmatpush1.bf16.msra.mxu0 %v439
  %1061 = vmatprep.subr.bf16.mxu0 %v436
  %1062 = vmatpush1.bf16.msra.mxu0 %v435
  %1063 = vmatprep.subr.bf16.mxu0 %v432
  %1064 = vmatpush1.bf16.msra.mxu0 %v431
  %1065 = vmatprep.subr.bf16.mxu0 %v428
  %1066 = vmatpush1.bf16.msra.mxu0 %v427
  %1067 = vmatprep.subr.bf16.mxu0 0
  %1068 = vmatpush2.bf16.msra.mxu0 0
  %1069 = vmatprep.subr.bf16.mxu0 0
  %1070 = vmatpush2.bf16.msra.mxu0 0
  %1071 = vmatprep.subr.bf16.mxu0 0
  %1072 = vmatpush2.bf16.msra.mxu0 0
  %1073 = vmatprep.subr.bf16.mxu0 0
  %1074 = vmatpush2.bf16.msra.mxu0 0
  %1075 = vmatprep.subr.bf16.mxu0 0
  %1076 = vmatpush2.bf16.msra.mxu0 0
  %1077 = vmatprep.subr.bf16.mxu0 0
  %1078 = vmatpush2.bf16.msra.mxu0 0
  %1079 = vmatprep.subr.bf16.mxu0 0
  %1080 = vmatpush2.bf16.msra.mxu0 0
  %1081 = vmatprep.subr.bf16.mxu0 0
  %1082 = vmatpush2.bf16.msra.mxu0 0
  %1083 = vmatprep.mubr.bf16.mxu0 0
  %1084 = vmatmul.mubr.bf16.gmra.mxu0 %v1050
  %v1085 = vpop.f32.mrf.mxu0
  %v1086 = vadd.f32 0.0, %v1085
  %v1087 = vpop.f32.mrf.mxu0
  %v1088 = vadd.f32 0.0, %v1087
  %v1089 = vpop.f32.mrf.mxu0
  %v1090 = vpop.f32.mrf.mxu0
  %1091 = vdwg.mxu0
  %1092 = vmatprep.subr.bf16.mxu0 %v458
  %1093 = vmatpush1.bf16.msra.mxu0 %v457
  %1094 = vmatprep.subr.bf16.mxu0 %v454
  %1095 = vmatpush1.bf16.msra.mxu0 %v453
  %1096 = vmatprep.subr.bf16.mxu0 %v450
  %1097 = vmatpush1.bf16.msra.mxu0 %v449
  %1098 = vmatprep.subr.bf16.mxu0 %v446
  %1099 = vmatpush1.bf16.msra.mxu0 %v445
  %1100 = vmatprep.subr.bf16.mxu0 %v442
  %1101 = vmatpush1.bf16.msra.mxu0 %v441
  %1102 = vmatprep.subr.bf16.mxu0 %v438
  %1103 = vmatpush1.bf16.msra.mxu0 %v437
  %1104 = vmatprep.subr.bf16.mxu0 %v434
  %1105 = vmatpush1.bf16.msra.mxu0 %v433
  %1106 = vmatprep.subr.bf16.mxu0 %v430
  %1107 = vmatpush1.bf16.msra.mxu0 %v429
  %1108 = vmatprep.subr.bf16.mxu0 0
  %1109 = vmatpush2.bf16.msra.mxu0 0
  %1110 = vmatprep.subr.bf16.mxu0 0
  %1111 = vmatpush2.bf16.msra.mxu0 0
  %1112 = vmatprep.subr.bf16.mxu0 0
  %1113 = vmatpush2.bf16.msra.mxu0 0
  %1114 = vmatprep.subr.bf16.mxu0 0
  %1115 = vmatpush2.bf16.msra.mxu0 0
  %1116 = vmatprep.subr.bf16.mxu0 0
  %1117 = vmatpush2.bf16.msra.mxu0 0
  %1118 = vmatprep.subr.bf16.mxu0 0
  %1119 = vmatpush2.bf16.msra.mxu0 0
  %1120 = vmatprep.subr.bf16.mxu0 0
  %1121 = vmatpush2.bf16.msra.mxu0 0
  %1122 = vmatprep.subr.bf16.mxu0 0
  %1123 = vmatpush2.bf16.msra.mxu0 0
  %1124 = vmatprep.mubr.bf16.mxu0 0
  %1125 = vmatmul.mubr.bf16.gmra.mxu0 %v1050
  %v1126 = vpop.f32.mrf.mxu0
  %v1127 = vadd.f32 0.0, %v1126
  %v1128 = vpop.f32.mrf.mxu0
  %v1129 = vadd.f32 0.0, %v1128
  %v1130 = vpop.f32.mrf.mxu0
  %v1131 = vpop.f32.mrf.mxu0
  %1132 = vdwg.mxu0
  %v1133 = vadd.f32 %v1046, %v1086
  %v1134 = vadd.f32 %v1047, %v1088
  %v1135 = vadd.f32 %v1048, %v1127
  %v1136 = vadd.f32 %v1049, %v1129
  %v1137 = vmul.f32 %v1133, 0.5
  %v1138 = vtanh.pop %v1137
  %v1139 = vmul.f32 %v1138, 0.5
  %v1140 = vadd.f32 %v1139, 0.5
  %v1141 = vmul.f32 %v1134, 0.5
  %v1142 = vtanh.pop %v1141
  %v1143 = vmul.f32 %v1142, 0.5
  %v1144 = vadd.f32 %v1143, 0.5
  %v1145 = vtanh.pop %v1135
  %v1146 = vmul.f32 %v1136, 0.5
  %v1147 = vtanh.pop %v1146
  %v1148 = vmul.f32 %v1147, 0.5
  %v1149 = vadd.f32 %v1148, 0.5
  %v1150 = vmul.f32 %v1144, %v1040
  %v1151 = vmul.f32 %v1140, %v1145
  %v1152 = vadd.f32 %v1150, %v1151
  %v1153 = vtanh.pop %v1152
  %v1154 = vmul.f32 %v1149, %v1153
  %s1155 = smul.u32 6, 4
  %s1156 = smul.addr %s1155, 8
  %s1157 = scalar_lea.vmem [#allocation2], %s1156
  %v1158 = vld [vmem:[%s1157] sm:$0xff]
  %v1159 = vld [vmem:[%s1157 + $0x8] sm:$0xff]
  %v1160 = vld [vmem:[%s1157 + $0x10] sm:$0xff]
  %v1161 = vld [vmem:[%s1157 + $0x18] sm:$0xff]
  %v1162 = vpack.c.bf16 %v1154, %v1154
  %1163 = vmatprep.subr.bf16.mxu0 %v456
  %1164 = vmatpush1.bf16.msra.mxu0 %v455
  %1165 = vmatprep.subr.bf16.mxu0 %v452
  %1166 = vmatpush1.bf16.msra.mxu0 %v451
  %1167 = vmatprep.subr.bf16.mxu0 %v448
  %1168 = vmatpush1.bf16.msra.mxu0 %v447
  %1169 = vmatprep.subr.bf16.mxu0 %v444
  %1170 = vmatpush1.bf16.msra.mxu0 %v443
  %1171 = vmatprep.subr.bf16.mxu0 %v440
  %1172 = vmatpush1.bf16.msra.mxu0 %v439
  %1173 = vmatprep.subr.bf16.mxu0 %v436
  %1174 = vmatpush1.bf16.msra.mxu0 %v435
  %1175 = vmatprep.subr.bf16.mxu0 %v432
  %1176 = vmatpush1.bf16.msra.mxu0 %v431
  %1177 = vmatprep.subr.bf16.mxu0 %v428
  %1178 = vmatpush1.bf16.msra.mxu0 %v427
  %1179 = vmatprep.subr.bf16.mxu0 0
  %1180 = vmatpush2.bf16.msra.mxu0 0
  %1181 = vmatprep.subr.bf16.mxu0 0
  %1182 = vmatpush2.bf16.msra.mxu0 0
  %1183 = vmatprep.subr.bf16.mxu0 0
  %1184 = vmatpush2.bf16.msra.mxu0 0
  %1185 = vmatprep.subr.bf16.mxu0 0
  %1186 = vmatpush2.bf16.msra.mxu0 0
  %1187 = vmatprep.subr.bf16.mxu0 0
  %1188 = vmatpush2.bf16.msra.mxu0 0
  %1189 = vmatprep.subr.bf16.mxu0 0
  %1190 = vmatpush2.bf16.msra.mxu0 0
  %1191 = vmatprep.subr.bf16.mxu0 0
  %1192 = vmatpush2.bf16.msra.mxu0 0
  %1193 = vmatprep.subr.bf16.mxu0 0
  %1194 = vmatpush2.bf16.msra.mxu0 0
  %1195 = vmatprep.mubr.bf16.mxu0 0
  %1196 = vmatmul.mubr.bf16.gmra.mxu0 %v1162
  %v1197 = vpop.f32.mrf.mxu0
  %v1198 = vadd.f32 0.0, %v1197
  %v1199 = vpop.f32.mrf.mxu0
  %v1200 = vadd.f32 0.0, %v1199
  %v1201 = vpop.f32.mrf.mxu0
  %v1202 = vpop.f32.mrf.mxu0
  %1203 = vdwg.mxu0
  %1204 = vmatprep.subr.bf16.mxu0 %v458
  %1205 = vmatpush1.bf16.msra.mxu0 %v457
  %1206 = vmatprep.subr.bf16.mxu0 %v454
  %1207 = vmatpush1.bf16.msra.mxu0 %v453
  %1208 = vmatprep.subr.bf16.mxu0 %v450
  %1209 = vmatpush1.bf16.msra.mxu0 %v449
  %1210 = vmatprep.subr.bf16.mxu0 %v446
  %1211 = vmatpush1.bf16.msra.mxu0 %v445
  %1212 = vmatprep.subr.bf16.mxu0 %v442
  %1213 = vmatpush1.bf16.msra.mxu0 %v441
  %1214 = vmatprep.subr.bf16.mxu0 %v438
  %1215 = vmatpush1.bf16.msra.mxu0 %v437
  %1216 = vmatprep.subr.bf16.mxu0 %v434
  %1217 = vmatpush1.bf16.msra.mxu0 %v433
  %1218 = vmatprep.subr.bf16.mxu0 %v430
  %1219 = vmatpush1.bf16.msra.mxu0 %v429
  %1220 = vmatprep.subr.bf16.mxu0 0
  %1221 = vmatpush2.bf16.msra.mxu0 0
  %1222 = vmatprep.subr.bf16.mxu0 0
  %1223 = vmatpush2.bf16.msra.mxu0 0
  %1224 = vmatprep.subr.bf16.mxu0 0
  %1225 = vmatpush2.bf16.msra.mxu0 0
  %1226 = vmatprep.subr.bf16.mxu0 0
  %1227 = vmatpush2.bf16.msra.mxu0 0
  %1228 = vmatprep.subr.bf16.mxu0 0
  %1229 = vmatpush2.bf16.msra.mxu0 0
  %1230 = vmatprep.subr.bf16.mxu0 0
  %1231 = vmatpush2.bf16.msra.mxu0 0
  %1232 = vmatprep.subr.bf16.mxu0 0
  %1233 = vmatpush2.bf16.msra.mxu0 0
  %1234 = vmatprep.subr.bf16.mxu0 0
  %1235 = vmatpush2.bf16.msra.mxu0 0
  %1236 = vmatprep.mubr.bf16.mxu0 0
  %1237 = vmatmul.mubr.bf16.gmra.mxu0 %v1162
  %v1238 = vpop.f32.mrf.mxu0
  %v1239 = vadd.f32 0.0, %v1238
  %v1240 = vpop.f32.mrf.mxu0
  %v1241 = vadd.f32 0.0, %v1240
  %v1242 = vpop.f32.mrf.mxu0
  %v1243 = vpop.f32.mrf.mxu0
  %1244 = vdwg.mxu0
  %v1245 = vadd.f32 %v1158, %v1198
  %v1246 = vadd.f32 %v1159, %v1200
  %v1247 = vadd.f32 %v1160, %v1239
  %v1248 = vadd.f32 %v1161, %v1241
  %v1249 = vmul.f32 %v1245, 0.5
  %v1250 = vtanh.pop %v1249
  %v1251 = vmul.f32 %v1250, 0.5
  %v1252 = vadd.f32 %v1251, 0.5
  %v1253 = vmul.f32 %v1246, 0.5
  %v1254 = vtanh.pop %v1253
  %v1255 = vmul.f32 %v1254, 0.5
  %v1256 = vadd.f32 %v1255, 0.5
  %v1257 = vtanh.pop %v1247
  %v1258 = vmul.f32 %v1248, 0.5
  %v1259 = vtanh.pop %v1258
  %v1260 = vmul.f32 %v1259, 0.5
  %v1261 = vadd.f32 %v1260, 0.5
  %v1262 = vmul.f32 %v1256, %v1152
  %v1263 = vmul.f32 %v1252, %v1257
  %v1264 = vadd.f32 %v1262, %v1263
  %v1265 = vtanh.pop %v1264
  %v1266 = vmul.f32 %v1261, %v1265
  %s1267 = smul.u32 7, 4
  %s1268 = smul.addr %s1267, 8
  %s1269 = scalar_lea.vmem [#allocation2], %s1268
  %v1270 = vld [vmem:[%s1269] sm:$0xff]
  %v1271 = vld [vmem:[%s1269 + $0x8] sm:$0xff]
  %v1272 = vld [vmem:[%s1269 + $0x10] sm:$0xff]
  %v1273 = vld [vmem:[%s1269 + $0x18] sm:$0xff]
  %v1274 = vpack.c.bf16 %v1266, %v1266
  %1275 = vmatprep.subr.bf16.mxu0 %v456
  %1276 = vmatpush1.bf16.msra.mxu0 %v455
  %1277 = vmatprep.subr.bf16.mxu0 %v452
  %1278 = vmatpush1.bf16.msra.mxu0 %v451
  %1279 = vmatprep.subr.bf16.mxu0 %v448
  %1280 = vmatpush1.bf16.msra.mxu0 %v447
  %1281 = vmatprep.subr.bf16.mxu0 %v444
  %1282 = vmatpush1.bf16.msra.mxu0 %v443
  %1283 = vmatprep.subr.bf16.mxu0 %v440
  %1284 = vmatpush1.bf16.msra.mxu0 %v439
  %1285 = vmatprep.subr.bf16.mxu0 %v436
  %1286 = vmatpush1.bf16.msra.mxu0 %v435
  %1287 = vmatprep.subr.bf16.mxu0 %v432
  %1288 = vmatpush1.bf16.msra.mxu0 %v431
  %1289 = vmatprep.subr.bf16.mxu0 %v428
  %1290 = vmatpush1.bf16.msra.mxu0 %v427
  %1291 = vmatprep.subr.bf16.mxu0 0
  %1292 = vmatpush2.bf16.msra.mxu0 0
  %1293 = vmatprep.subr.bf16.mxu0 0
  %1294 = vmatpush2.bf16.msra.mxu0 0
  %1295 = vmatprep.subr.bf16.mxu0 0
  %1296 = vmatpush2.bf16.msra.mxu0 0
  %1297 = vmatprep.subr.bf16.mxu0 0
  %1298 = vmatpush2.bf16.msra.mxu0 0
  %1299 = vmatprep.subr.bf16.mxu0 0
  %1300 = vmatpush2.bf16.msra.mxu0 0
  %1301 = vmatprep.subr.bf16.mxu0 0
  %1302 = vmatpush2.bf16.msra.mxu0 0
  %1303 = vmatprep.subr.bf16.mxu0 0
  %1304 = vmatpush2.bf16.msra.mxu0 0
  %1305 = vmatprep.subr.bf16.mxu0 0
  %1306 = vmatpush2.bf16.msra.mxu0 0
  %1307 = vmatprep.mubr.bf16.mxu0 0
  %1308 = vmatmul.mubr.bf16.gmra.mxu0 %v1274
  %v1309 = vpop.f32.mrf.mxu0
  %v1310 = vadd.f32 0.0, %v1309
  %v1311 = vpop.f32.mrf.mxu0
  %v1312 = vadd.f32 0.0, %v1311
  %v1313 = vpop.f32.mrf.mxu0
  %v1314 = vpop.f32.mrf.mxu0
  %1315 = vdwg.mxu0
  %1316 = vmatprep.subr.bf16.mxu0 %v458
  %1317 = vmatpush1.bf16.msra.mxu0 %v457
  %1318 = vmatprep.subr.bf16.mxu0 %v454
  %1319 = vmatpush1.bf16.msra.mxu0 %v453
  %1320 = vmatprep.subr.bf16.mxu0 %v450
  %1321 = vmatpush1.bf16.msra.mxu0 %v449
  %1322 = vmatprep.subr.bf16.mxu0 %v446
  %1323 = vmatpush1.bf16.msra.mxu0 %v445
  %1324 = vmatprep.subr.bf16.mxu0 %v442
  %1325 = vmatpush1.bf16.msra.mxu0 %v441
  %1326 = vmatprep.subr.bf16.mxu0 %v438
  %1327 = vmatpush1.bf16.msra.mxu0 %v437
  %1328 = vmatprep.subr.bf16.mxu0 %v434
  %1329 = vmatpush1.bf16.msra.mxu0 %v433
  %1330 = vmatprep.subr.bf16.mxu0 %v430
  %1331 = vmatpush1.bf16.msra.mxu0 %v429
  %1332 = vmatprep.subr.bf16.mxu0 0
  %1333 = vmatpush2.bf16.msra.mxu0 0
  %1334 = vmatprep.subr.bf16.mxu0 0
  %1335 = vmatpush2.bf16.msra.mxu0 0
  %1336 = vmatprep.subr.bf16.mxu0 0
  %1337 = vmatpush2.bf16.msra.mxu0 0
  %1338 = vmatprep.subr.bf16.mxu0 0
  %1339 = vmatpush2.bf16.msra.mxu0 0
  %1340 = vmatprep.subr.bf16.mxu0 0
  %1341 = vmatpush2.bf16.msra.mxu0 0
  %1342 = vmatprep.subr.bf16.mxu0 0
  %1343 = vmatpush2.bf16.msra.mxu0 0
  %1344 = vmatprep.subr.bf16.mxu0 0
  %1345 = vmatpush2.bf16.msra.mxu0 0
  %1346 = vmatprep.subr.bf16.mxu0 0
  %1347 = vmatpush2.bf16.msra.mxu0 0
  %1348 = vmatprep.mubr.bf16.mxu0 0
  %1349 = vmatmul.mubr.bf16.gmra.mxu0 %v1274
  %v1350 = vpop.f32.mrf.mxu0
  %v1351 = vadd.f32 0.0, %v1350
  %v1352 = vpop.f32.mrf.mxu0
  %v1353 = vadd.f32 0.0, %v1352
  %v1354 = vpop.f32.mrf.mxu0
  %v1355 = vpop.f32.mrf.mxu0
  %1356 = vdwg.mxu0
  %v1357 = vadd.f32 %v1270, %v1310
  %v1358 = vadd.f32 %v1271, %v1312
  %v1359 = vadd.f32 %v1272, %v1351
  %v1360 = vadd.f32 %v1273, %v1353
  %v1361 = vmul.f32 %v1357, 0.5
  %v1362 = vtanh.pop %v1361
  %v1363 = vmul.f32 %v1362, 0.5
  %v1364 = vadd.f32 %v1363, 0.5
  %v1365 = vmul.f32 %v1358, 0.5
  %v1366 = vtanh.pop %v1365
  %v1367 = vmul.f32 %v1366, 0.5
  %v1368 = vadd.f32 %v1367, 0.5
  %v1369 = vtanh.pop %v1359
  %v1370 = vmul.f32 %v1360, 0.5
  %v1371 = vtanh.pop %v1370
  %v1372 = vmul.f32 %v1371, 0.5
  %v1373 = vadd.f32 %v1372, 0.5
  %v1374 = vmul.f32 %v1368, %v1264
  %v1375 = vmul.f32 %v1364, %v1369
  %v1376 = vadd.f32 %v1374, %v1375
  %v1377 = vtanh.pop %v1376
  %v1378 = vmul.f32 %v1373, %v1377
  %1379 = vst [vmem:[#allocation3] sm:$0xff] %v1378
  %1380 = vst [vmem:[#allocation4] sm:$0xff] %v1376
  // Predicated region
  $region22: #{lstm_model_forward.1} parent=0 // pred_check
    %p1381 = pneg %p18
  $region23: #{lstm_model_forward.1} parent=0 // pred_check_branch
    %1383 = sbr.rel (%p1381) target = $region25
  $region24: #{lstm_model_forward.1} parent=0 // pred_region
    %1384 = vst [vmem:[%s4] sm:$0xff] %v1378
  $region25: #{lstm_model_forward.1} parent=0 // pred_fallthru
    _
  // Predicated region
  $region26: #{lstm_model_forward.1} parent=0 // pred_check
    _
  $region27: #{lstm_model_forward.1} parent=0 // pred_check_branch
    %1386 = sbr.rel (0) target = $region29
  $region28: #{lstm_model_forward.1} parent=0 // pred_region
    _
  $region29: #{lstm_model_forward.1} parent=0 // pred_fallthru
    _
  // Predicated region
  $region30: #{lstm_model_forward.1} parent=0 // pred_check
    _
  $region31: #{lstm_model_forward.1} parent=0 // pred_check_branch
    %1388 = sbr.rel (0) target = $region33
  $region32: #{lstm_model_forward.1} parent=0 // pred_region
    _
  $region33: #{lstm_model_forward.1} parent=0 // pred_fallthru
    _

</llo_original>
